<compile_context>
chip_gen: v7x
topology: tpu7x:2x2x1
jax: 0.10.0
libtpu: 0.0.40
codegen_flags: <defaults>
</compile_context>

<pallas_src>
import jax
import jax.numpy as jnp
from jax.experimental import pallas as pl
from jax.experimental.pallas import tpu as pltpu


# ----------------------------------------------------------------------------
# Hardware / sizing helpers
# ----------------------------------------------------------------------------
def _vmem_cap_bytes():
    """7/8 of the per-core VMEM capacity (headroom for Mosaic scratch)."""
    cap = 64 << 20  # conservative default: v7x per-TC VMEM
    try:
        info = pltpu.get_tpu_info()
        cap = int(getattr(info, "vmem_capacity_bytes", cap))
    except Exception:
        pass
    return max(32 << 20, (cap * 7) // 8)


def _choose_batch_tile(B):
    """Prefer tb=256 (full MXU M on v6e/v7x, fewer weight re-streams) while
    keeping n_b >= 2 so the 'parallel' axis shards across v7x's 2 TCs."""
    for t in (256, 128, 64, 32, 16, 8):
        if B % t == 0 and B // t >= 2:
            return t
    for t in (256, 128, 64, 32, 16, 8):
        if B % t == 0:
            return t
    return B


# ----------------------------------------------------------------------------
# Kernels
# ----------------------------------------------------------------------------
def _silu_gate(g):
    """g = [h1 | h3] (f32). Returns silu(h1) * h3 in f32 (EUP exp + recip)."""
    th = g.shape[1] // 2
    h1 = g[:, :th]  # static, lane-aligned split (th % 128 == 0 or th == hidden)
    h3 = g[:, th:]
    sig = pl.reciprocal(1.0 + jnp.exp(-h1), approx=True)
    return (h1 * sig) * h3


def _mlp_kernel_streamed(x_ref, w13_ref, w2_ref, o_ref, acc_ref):
    # x_ref:   (tb, dim)
    # w13_ref: (dim, 2*th)   -- [w1_k | w3_k] for current hidden tile k
    # w2_ref:  (th, dim)
    # o_ref:   (tb, dim)
    # acc_ref: (tb, dim) f32 accumulator over hidden tiles
    k = pl.program_id(1)

    @pl.when(k == 0)
    def _():
        acc_ref[...] = jnp.zeros_like(acc_ref)

    g = jnp.dot(x_ref[...], w13_ref[...], preferred_element_type=jnp.float32)
    h = _silu_gate(g)
    acc_ref[...] += jnp.dot(
        h.astype(w2_ref.dtype), w2_ref[...], preferred_element_type=jnp.float32
    )

    @pl.when(k == pl.num_programs(1) - 1)
    def _():
        o_ref[...] = acc_ref[...].astype(o_ref.dtype)


def _mlp_kernel_pinned(x_ref, w13_ref, w2_ref, o_ref):
    # Whole weights resident in VMEM: single fused step, no accumulator.
    g = jnp.dot(x_ref[...], w13_ref[...], preferred_element_type=jnp.float32)
    h = _silu_gate(g)
    o_ref[...] = jnp.dot(
        h.astype(w2_ref.dtype), w2_ref[...], preferred_element_type=jnp.float32
    ).astype(o_ref.dtype)


# ----------------------------------------------------------------------------
# One-time weight repacking (model-load time)
# ----------------------------------------------------------------------------
def prepare_weights(w1, w2, w3, *, th=None, dtype=None):
    """Repack PyTorch nn.Linear weights for the Pallas kernel.

    Args:
      w1: (hidden, dim)  PyTorch (out_features, in_features) layout
      w2: (dim, hidden)
      w3: (hidden, dim)
      th: hidden tile. None -> auto (full hidden when the packed weights fit
          in VMEM; else 512 on big-VMEM chips, 256 otherwise).
      dtype: target dtype for packed weights (e.g. jnp.bfloat16).
    Returns:
      (w13, w2p, th):
        w13: (dim, 2*hidden), per-hidden-tile interleaved [w1_k | w3_k]
        w2p: (hidden, dim)
    """
    hidden, dim = w1.shape
    if dtype is None:
        dtype = w1.dtype
    w_isz = jnp.dtype(dtype).itemsize

    if th is None:
        budget = _vmem_cap_bytes()
        packed_bytes = 3 * hidden * dim * w_isz
        if 2 * packed_bytes <= budget // 2:
            th = hidden  # pin whole weights in VMEM, no k loop
        else:
            th = 512 if budget > (80 << 20) else 256
            while th > 128 and hidden % th != 0:
                th //= 2
    th = min(th, hidden)

    assert hidden % th == 0, "hidden must be divisible by the hidden tile"
    assert th % 128 == 0 or th == hidden, "hidden tile must be a multiple of 128"

    n_k = hidden // th
    w1t = jnp.transpose(w1).reshape(dim, n_k, th)
    w3t = jnp.transpose(w3).reshape(dim, n_k, th)
    w13 = jnp.concatenate([w1t, w3t], axis=2).reshape(dim, 2 * hidden).astype(dtype)
    w2p = jnp.transpose(w2).astype(dtype)  # (hidden, dim)
    return w13, w2p, th


# ----------------------------------------------------------------------------
# Forward
# ----------------------------------------------------------------------------
def mlp_forward(x, w13, w2p, th, *, tb=None, weight_buffers=2, vmem_limit_bytes=None):
    """Forward: w2(silu(w1(x)) * w3(x)) with pre-packed weights.

    Args:
      x:   (B, dim)
      w13: (dim, 2*hidden) packed gate/up weight from prepare_weights
      w2p: (hidden, dim)   transposed down-projection weight
      th:  hidden tile (must match prepare_weights)
      tb:  batch tile (None -> auto; prefers 256 with n_b >= 2)
      weight_buffers: pipeline depth for the streamed weight blocks (2 default;
        3 can hide exposed per-k-step DMA on small tiles, VMEM permitting).
      vmem_limit_bytes: explicit VMEM cap; None -> computed from tile sizes.
    Returns:
      (B, dim), same dtype as x.
    """
    B, dim = x.shape
    hidden = w2p.shape[0]
    assert w13.shape == (dim, 2 * hidden)
    assert hidden % th == 0

    if tb is None:
        tb = _choose_batch_tile(B)
    tb = min(tb, B)
    assert B % tb == 0, "batch must be divisible by the batch tile"

    n_b = B // tb
    n_k = hidden // th

    x_isz = jnp.dtype(x.dtype).itemsize
    w_isz = jnp.dtype(w13.dtype).itemsize
    wbuf = max(2, int(weight_buffers))

    # Explicit VMEM budget: double-buffered x/out, wbuf-buffered weight tiles,
    # f32 accumulator, f32 intermediates (g: (tb,2*th), h: (tb,th)), headroom.
    est = (
        2 * tb * dim * x_isz                # x (double-buffered)
        + 2 * tb * dim * x_isz              # out (double-buffered)
        + wbuf * dim * 2 * th * w_isz       # w13 tile(s)
        + wbuf * th * dim * w_isz           # w2 tile(s)
        + tb * dim * 4                      # acc scratch
        + tb * 3 * th * 4                   # g + h intermediates (f32)
        + (8 << 20)                         # Mosaic internal scratch headroom
    )
    cap = _vmem_cap_bytes()
    if vmem_limit_bytes is None:
        vmem_limit_bytes = max(32 << 20, min(est, cap))
    vmem_limit_bytes = min(int(vmem_limit_bytes), cap)

    def _nbytes(a):
        return a.size * jnp.dtype(a.dtype).itemsize

    weight_reads = 1 if n_k == 1 else n_b  # weights re-streamed once per batch tile
    cost = pl.CostEstimate(
        flops=2 * B * dim * hidden * 3,
        transcendentals=B * hidden,
        bytes_accessed=int(
            _nbytes(x)
            + weight_reads * (_nbytes(w13) + _nbytes(w2p))
            + B * dim * x_isz
        ),
    )

    if n_k == 1:
        # ---- pinned path: whole weights resident in VMEM, 1-D grid over batch
        grid_spec = pltpu.PrefetchScalarGridSpec(
            num_scalar_prefetch=0,
            grid=(n_b,),
            in_specs=[
                pl.BlockSpec((tb, dim), lambda i: (i, 0)),            # x
                pl.BlockSpec((dim, 2 * hidden), lambda i: (0, 0)),    # w13 (pinned)
                pl.BlockSpec((hidden, dim), lambda i: (0, 0)),        # w2  (pinned)
            ],
            out_specs=pl.BlockSpec((tb, dim), lambda i: (i, 0)),
            scratch_shapes=[],
        )
        kernel = _mlp_kernel_pinned
        dim_sem = ("parallel",)
    else:
        # ---- streamed path: hidden reduction with f32 accumulator
        if wbuf != 2:
            w13_spec = pl.BlockSpec(
                (dim, 2 * th), lambda i, k: (0, k), pipeline_mode=pl.Buffered(wbuf)
            )
            w2_spec = pl.BlockSpec(
                (th, dim), lambda i, k: (k, 0), pipeline_mode=pl.Buffered(wbuf)
            )
        else:
            w13_spec = pl.BlockSpec((dim, 2 * th), lambda i, k: (0, k))
            w2_spec = pl.BlockSpec((th, dim), lambda i, k: (k, 0))

        grid_spec = pltpu.PrefetchScalarGridSpec(
            num_scalar_prefetch=0,
            grid=(n_b, n_k),
            in_specs=[
                pl.BlockSpec((tb, dim), lambda i, k: (i, 0)),  # x
                w13_spec,                                       # fused w1|w3 tile
                w2_spec,                                        # w2 tile
            ],
            out_specs=pl.BlockSpec((tb, dim), lambda i, k: (i, 0)),
            scratch_shapes=[pltpu.VMEM((tb, dim), jnp.float32)],
        )
        kernel = _mlp_kernel_streamed
        dim_sem = ("parallel", "arbitrary")

    return pl.pallas_call(
        kernel,
        out_shape=jax.ShapeDtypeStruct((B, dim), x.dtype),
        grid_spec=grid_spec,
        compiler_params=pltpu.CompilerParams(
            dimension_semantics=dim_sem,
            vmem_limit_bytes=vmem_limit_bytes,
        ),
        cost_estimate=cost,
    )(x, w13, w2p)


# ----------------------------------------------------------------------------
# Self-test
# ----------------------------------------------------------------------------
if __name__ == "__main__":
    # Small but TPU-tile-friendly shapes (128-lane aligned; B large enough that
    # the auto batch tile keeps n_b >= 2 so both v7x TensorCores get work).
    B, DIM, HIDDEN = 256, 256, 512

    key = jax.random.PRNGKey(0)
    kx, k1, k2, k3 = jax.random.split(key, 4)

    x = jax.random.normal(kx, (B, DIM), dtype=jnp.float32)
    # PyTorch nn.Linear weight layout: (out_features, in_features).
    w1 = jax.random.normal(k1, (HIDDEN, DIM), dtype=jnp.float32) * 0.02
    w2 = jax.random.normal(k2, (DIM, HIDDEN), dtype=jnp.float32) * 0.02
    w3 = jax.random.normal(k3, (HIDDEN, DIM), dtype=jnp.float32) * 0.02

    # Pure-JAX reference (f32, exact sigmoid).
    h1 = x @ w1.T
    h3 = x @ w3.T
    ref = (h1 * jax.nn.sigmoid(h1) * h3) @ w2.T

    # --- f32, streamed path (forced th=256 -> 2 hidden tiles, accumulator) ---
    w13_s, w2p_s, th_s = prepare_weights(w1, w2, w3, th=256)
    out_s = jax.block_until_ready(mlp_forward(x, w13_s, w2p_s, th_s))
    assert out_s.shape == (B, DIM)
    assert jnp.allclose(out_s, ref, atol=2e-3, rtol=2e-2), "f32 streamed mismatch"

    # --- f32, auto/pinned path (whole weights resident in VMEM) --------------
    w13_p, w2p_p, th_p = prepare_weights(w1, w2, w3)  # th auto -> pinned here
    out_p = jax.block_until_ready(mlp_forward(x, w13_p, w2p_p, th_p))
    assert out_p.shape == (B, DIM)
    assert jnp.allclose(out_p, ref, atol=2e-3, rtol=2e-2), "f32 pinned mismatch"

    # --- bf16 path (bf16 MXU operands, f32 accumulation + f32 SiLU) ----------
    w13_b, w2p_b, th_b = prepare_weights(w1, w2, w3, dtype=jnp.bfloat16)
    out_b = jax.block_until_ready(
        mlp_forward(x.astype(jnp.bfloat16), w13_b, w2p_b, th_b)
    )
    assert out_b.shape == (B, DIM)
    assert jnp.allclose(
        out_b.astype(jnp.float32), ref, atol=1e-2, rtol=1e-1
    ), "bf16 mismatch vs reference"

    print("KERNEL_OK")
</pallas_src>

<mosaic_0001>
module attributes {stable_mosaic.version = 11 : i64} {
  func.func @_mlp_kernel_streamed(%arg0: i32, %arg1: i32, %arg2: memref<128x256xf32, #tpu.memory_space<vmem>>, %arg3: memref<256x512xf32, #tpu.memory_space<vmem>>, %arg4: memref<256x256xf32, #tpu.memory_space<vmem>>, %arg5: memref<128x256xf32, #tpu.memory_space<vmem>>, %arg6: memref<128x256xf32, #tpu.memory_space<vmem>>) attributes {dimension_semantics = [#tpu.dimension_semantics<parallel>, #tpu.dimension_semantics<arbitrary>], iteration_bounds = array<i64: 2, 2>, scalar_prefetch = 0 : i64, scratch_operands = 1 : i64, tpu.core_type = #tpu.core_type<tc>, window_params = [{transform_indices = @transform_0, window_bounds = array<i64: 128, 256>}, {transform_indices = @transform_1, window_bounds = array<i64: 256, 512>}, {transform_indices = @transform_2, window_bounds = array<i64: 256, 256>}, {transform_indices = @transform_3, window_bounds = array<i64: 128, 256>}]} {
    %c0_i32 = arith.constant 0 : i32
    %0 = arith.cmpi eq, %arg1, %c0_i32 : i32
    %1 = arith.extui %0 : i1 to i32
    %c0_i32_0 = arith.constant 0 : i32
    %2 = arith.cmpi ne, %1, %c0_i32_0 : i32
    scf.if %2 {
      %cst_14 = arith.constant 0.000000e+00 : f32
      %24 = vector.broadcast %cst_14 : f32 to vector<128x256xf32>
      %c0_15 = arith.constant 0 : index
      %c0_16 = arith.constant 0 : index
      %25 = vector.load %arg6[%c0_15, %c0_16] : memref<128x256xf32, #tpu.memory_space<vmem>>, vector<128x256xf32>
      tpu.vector_store %arg6[%c0_15, %c0_16], %24 {strides = array<i32>} : memref<128x256xf32, #tpu.memory_space<vmem>>, vector<128x256xf32>,
    } else {
    }
    %c0 = arith.constant 0 : index
    %c0_1 = arith.constant 0 : index
    %3 = vector.load %arg2[%c0, %c0_1] : memref<128x256xf32, #tpu.memory_space<vmem>>, vector<128x256xf32>
    %c0_2 = arith.constant 0 : index
    %c0_3 = arith.constant 0 : index
    %4 = vector.load %arg3[%c0_2, %c0_3] : memref<256x512xf32, #tpu.memory_space<vmem>>, vector<256x512xf32>
    %cst = arith.constant dense<0.000000e+00> : vector<128x512xf32>
    %5 = tpu.matmul %3, %4, %cst {dimension_numbers = #tpu.dot_dimension_numbers<[1], [0], [0], [1], [0, 0, 1, 1], [], []>} : vector<128x256xf32>, vector<256x512xf32>, vector<128x512xf32> -> vector<128x512xf32>
    %6 = vector.extract_strided_slice %5 {offsets = [0, 0], sizes = [128, 256], strides = [1, 1]} : vector<128x512xf32> to vector<128x256xf32>
    %7 = vector.extract_strided_slice %5 {offsets = [0, 256], sizes = [128, 256], strides = [1, 1]} : vector<128x512xf32> to vector<128x256xf32>
    %cst_4 = arith.constant 0.000000e+00 : f32
    %8 = vector.broadcast %cst_4 : f32 to vector<128x256xf32>
    %9 = arith.subf %8, %6 : vector<128x256xf32>
    %10 = math.exp %9 : vector<128x256xf32>
    %cst_5 = arith.constant 1.000000e+00 : f32
    %11 = vector.broadcast %cst_5 : f32 to vector<128x256xf32>
    %12 = arith.addf %11, %10 : vector<128x256xf32>
    %13 = tpu.reciprocal %12 {approx = true} : vector<128x256xf32> -> vector<128x256xf32>
    %14 = arith.mulf %6, %13 : vector<128x256xf32>
    %15 = arith.mulf %14, %7 : vector<128x256xf32>
    %c0_6 = arith.constant 0 : index
    %c0_7 = arith.constant 0 : index
    %16 = vector.load %arg6[%c0_6, %c0_7] : memref<128x256xf32, #tpu.memory_space<vmem>>, vector<128x256xf32>
    %c0_8 = arith.constant 0 : index
    %c0_9 = arith.constant 0 : index
    %17 = vector.load %arg4[%c0_8, %c0_9] : memref<256x256xf32, #tpu.memory_space<vmem>>, vector<256x256xf32>
    %cst_10 = arith.constant dense<0.000000e+00> : vector<128x256xf32>
    %18 = tpu.matmul %15, %17, %cst_10 {dimension_numbers = #tpu.dot_dimension_numbers<[1], [0], [0], [1], [0, 0, 1, 1], [], []>} : vector<128x256xf32>, vector<256x256xf32>, vector<128x256xf32> -> vector<128x256xf32>
    %19 = arith.addf %16, %18 : vector<128x256xf32>
    %c0_11 = arith.constant 0 : index
    %c0_12 = arith.constant 0 : index
    %20 = vector.load %arg6[%c0_11, %c0_12] : memref<128x256xf32, #tpu.memory_space<vmem>>, vector<128x256xf32>
    tpu.vector_store %arg6[%c0_11, %c0_12], %19 {strides = array<i32>} : memref<128x256xf32, #tpu.memory_space<vmem>>, vector<128x256xf32>,
    %c1_i32 = arith.constant 1 : i32
    %21 = arith.cmpi eq, %arg1, %c1_i32 : i32
    %22 = arith.extui %21 : i1 to i32
    %c0_i32_13 = arith.constant 0 : i32
    %23 = arith.cmpi ne, %22, %c0_i32_13 : i32
    scf.if %23 {
      %c0_14 = arith.constant 0 : index
      %c0_15 = arith.constant 0 : index
      %24 = vector.load %arg6[%c0_14, %c0_15] : memref<128x256xf32, #tpu.memory_space<vmem>>, vector<128x256xf32>
      %c0_16 = arith.constant 0 : index
      %c0_17 = arith.constant 0 : index
      %25 = vector.load %arg5[%c0_16, %c0_17] : memref<128x256xf32, #tpu.memory_space<vmem>>, vector<128x256xf32>
      tpu.vector_store %arg5[%c0_16, %c0_17], %24 {strides = array<i32>} : memref<128x256xf32, #tpu.memory_space<vmem>>, vector<128x256xf32>,
    } else {
    }
    return
  }
  func.func @transform_0(%arg0: i32, %arg1: i32) -> (i32, i32) {
    %c0_i32 = arith.constant 0 : i32
    %c0_i32_0 = arith.constant 0 : i32
    return %arg0, %c0_i32 : i32, i32
  }
  func.func @transform_1(%arg0: i32, %arg1: i32) -> (i32, i32) {
    %c0_i32 = arith.constant 0 : i32
    %c0_i32_0 = arith.constant 0 : i32
    return %c0_i32, %arg1 : i32, i32
  }
  func.func @transform_2(%arg0: i32, %arg1: i32) -> (i32, i32) {
    %c0_i32 = arith.constant 0 : i32
    %c0_i32_0 = arith.constant 0 : i32
    return %arg1, %c0_i32 : i32, i32
  }
  func.func @transform_3(%arg0: i32, %arg1: i32) -> (i32, i32) {
    %c0_i32 = arith.constant 0 : i32
    %c0_i32_0 = arith.constant 0 : i32
    return %arg0, %c0_i32 : i32, i32
  }
}

</mosaic_0001>

<llo_original>
// kernel: tpu_custom_call.1
$region0: #{tpu_custom_call.1}
  #allocation0 [shape = 'u32[]', space=smem, size = 0x4, offset = 0x4, fixed_abs, tag = 'smem constant byte address 0x4 - core index']
  #allocation1 [shape = 'u32[144,128]{1,0:T(1,128)}', space=vmem, size = 0x12000, scoped, tag = 'internal scratch']
  #allocation2 [shape = 'f32[128,256]{1,0:T(8,128)}', space=vmem, size = 0x20000, scoped, tag = 'scratch operand']
  %s0 = inlined_call_operand.hbm [shape: f32[256,256], index: 0, kind: input, shape index: {}]
  %s1 = inlined_call_operand.hbm [shape: f32[256,1024], index: 1, kind: input, shape index: {}]
  %s2 = inlined_call_operand.hbm [shape: f32[512,256], index: 2, kind: input, shape index: {}]
  %s3 = inlined_call_operand.hbm [shape: f32[256,256], index: 3, kind: output, shape index: {}]
  %s4 = sld [smem:[#allocation0]]
  $region65: #{tpu_custom_call.1} parent=0
    _
  %s6 = ssub.s32 1, %s4
  %s7 = scalar_select 0, %s6, %s4
  $region1: #{tpu_custom_call.1} parent=0
    #allocation3 [shape = 'u8[262144]{0}', space=vmem, size = 0x40000, scoped, tag = 'input window, operand 0']
    #allocation4 [shape = 's32[2]{0}', space=sflag, size = 0x8, scoped, tag = 'scoped memory for tpu_custom_call.1']
    #allocation5 [shape = 's32[2]{0}', space=sflag, size = 0x8, scoped, tag = 'scoped memory for tpu_custom_call.1']
    #allocation6 [shape = 'u8[1048576]{0}', space=vmem, size = 0x100000, scoped, tag = 'input window, operand 1']
    #allocation7 [shape = 's32[2]{0}', space=sflag, size = 0x8, scoped, tag = 'scoped memory for tpu_custom_call.1']
    #allocation8 [shape = 'u8[524288]{0}', space=vmem, size = 0x80000, scoped, tag = 'input window, operand 2']
    #allocation9 [shape = 'u8[262144]{0}', space=vmem, size = 0x40000, scoped, tag = 'output window, operand 0']
    %8 = vsyncpa [#allocation4], 0
    %s9 = scalar_lea.sflag [#allocation4], 1
    %10 = vsyncpa %s9, 0
    %11 = vsyncpa [#allocation7], 0
    %s12 = scalar_lea.sflag [#allocation7], 1
    %13 = vsyncpa %s12, 0
    %14 = vsyncpa [#allocation5], 0
    %s15 = scalar_lea.sflag [#allocation5], 1
    %16 = vsyncpa %s15, 0
    loop: start=0, step=1, limit=6
    $region2: #{tpu_custom_call.1} parent=1 // loop_pre_header
      _
    $region3: #{tpu_custom_call.1} parent=1 // loop_header
      %s18 = sphi 0, %s22
      %p19 = scmp.ge.s32.totalorder %s18, 6
      %s25 = sphi 0, %s37
      %s26 = sphi 0, %s33
      %s27 = sphi 0, %s25
      %s28 = sphi 0, %s26
      %s29 = sphi 0, %s27
      %s30 = sphi 0, %s28
      %s40 = sphi 0, %s42
      %s43 = sphi 0, %s40
      %s44 = sphi 0, %s43
      %s60 = sphi 0, %s44
      %s66 = sphi 0, %s68
      %s69 = sphi 0, %s66
      %s70 = sphi 0, %s69
      %s86 = sphi 0, %s70
      %s92 = sphi 0, %s94
      %s95 = sphi 0, %s92
      %s96 = sphi 0, %s95
      %s112 = sphi 0, %s96
      %s118 = sphi 0, %s120
      %s121 = sphi 0, %s118
      %s122 = sphi 0, %s121
      %s138 = sphi 0, %s122
    $region4: #{tpu_custom_call.1} parent=1 // loop_header_branch
      %21 = sbr.rel (%p19) target = $region8
    $region5: #{tpu_custom_call.1} parent=1 // loop_body
      %s23 = ssub.s32 %s18, 1
      %s24 = ssub.s32 %s18, 2
      %s31 = sadd.s32 1, %s26
      %p32 = scmp.ge.s32.totalorder %s31, 2
      %s33 = scalar_select %p32, 0, %s31
      %s34 = sadd.s32 1, %s25
      %s35 = scalar_select %p32, %s34, %s25
      %p36 = scmp.ge.s32.totalorder %s35, 2
      %s37 = scalar_select %p36, 0, %s35
      %s38 = ssub.s32 %s25, %s37
      %p39 = scmp.eq.s32.totalorder %s38, 0
      %s41 = sadd.s32 %s40, 1
      %s42 = scalar_select %p39, %s40, %s41
      %p45 = pneg %p39
      %p46 = scmp.eq.s32.totalorder %s18, 3
      %p47 = por %p45, %p46
      %p48 = scmp.ne.s32.totalorder %s40, %s43
      %p49 = scmp.eq.s32.totalorder %s18, 0
      %p50 = por %p48, %p49
      %p51 = scmp.ne.s32.totalorder %s40, %s43
      %p52 = scmp.eq.s32.totalorder %s23, 3
      %p53 = por %p51, %p52
      %p54 = scmp.ne.s32.totalorder %s43, %s44
      %p55 = scmp.eq.s32.totalorder %s23, 0
      %p56 = por %p54, %p55
      %p57 = scmp.ne.s32.totalorder %s43, %s44
      %p58 = scmp.eq.s32.totalorder %s24, 3
      %p59 = por %p57, %p58
      %p61 = scmp.ne.s32.totalorder %s44, %s60
      %p62 = scmp.eq.s32.totalorder %s24, 0
      %p63 = por %p61, %p62
      %s64 = ssub.s32 %s26, %s33
      %p65 = scmp.eq.s32.totalorder %s64, 0
      %s67 = sadd.s32 %s66, 1
      %s68 = scalar_select %p65, %s66, %s67
      %p71 = pneg %p65
      %p72 = scmp.eq.s32.totalorder %s18, 3
      %p73 = por %p71, %p72
      %p74 = scmp.ne.s32.totalorder %s66, %s69
      %p75 = scmp.eq.s32.totalorder %s18, 0
      %p76 = por %p74, %p75
      %p77 = scmp.ne.s32.totalorder %s66, %s69
      %p78 = scmp.eq.s32.totalorder %s23, 3
      %p79 = por %p77, %p78
      %p80 = scmp.ne.s32.totalorder %s69, %s70
      %p81 = scmp.eq.s32.totalorder %s23, 0
      %p82 = por %p80, %p81
      %p83 = scmp.ne.s32.totalorder %s69, %s70
      %p84 = scmp.eq.s32.totalorder %s24, 3
      %p85 = por %p83, %p84
      %p87 = scmp.ne.s32.totalorder %s70, %s86
      %p88 = scmp.eq.s32.totalorder %s24, 0
      %p89 = por %p87, %p88
      %s90 = ssub.s32 %s26, %s33
      %p91 = scmp.eq.s32.totalorder %s90, 0
      %s93 = sadd.s32 %s92, 1
      %s94 = scalar_select %p91, %s92, %s93
      %p97 = pneg %p91
      %p98 = scmp.eq.s32.totalorder %s18, 3
      %p99 = por %p97, %p98
      %p100 = scmp.ne.s32.totalorder %s92, %s95
      %p101 = scmp.eq.s32.totalorder %s18, 0
      %p102 = por %p100, %p101
      %p103 = scmp.ne.s32.totalorder %s92, %s95
      %p104 = scmp.eq.s32.totalorder %s23, 3
      %p105 = por %p103, %p104
      %p106 = scmp.ne.s32.totalorder %s95, %s96
      %p107 = scmp.eq.s32.totalorder %s23, 0
      %p108 = por %p106, %p107
      %p109 = scmp.ne.s32.totalorder %s95, %s96
      %p110 = scmp.eq.s32.totalorder %s24, 3
      %p111 = por %p109, %p110
      %p113 = scmp.ne.s32.totalorder %s96, %s112
      %p114 = scmp.eq.s32.totalorder %s24, 0
      %p115 = por %p113, %p114
      %s116 = ssub.s32 %s25, %s37
      %p117 = scmp.eq.s32.totalorder %s116, 0
      %s119 = sadd.s32 %s118, 1
      %s120 = scalar_select %p117, %s118, %s119
      %p123 = pneg %p117
      %p124 = scmp.eq.s32.totalorder %s18, 3
      %p125 = por %p123, %p124
      %p126 = scmp.ne.s32.totalorder %s118, %s121
      %p127 = scmp.eq.s32.totalorder %s18, 0
      %p128 = por %p126, %p127
      %p129 = scmp.ne.s32.totalorder %s118, %s121
      %p130 = scmp.eq.s32.totalorder %s23, 3
      %p131 = por %p129, %p130
      %p132 = scmp.ne.s32.totalorder %s121, %s122
      %p133 = scmp.eq.s32.totalorder %s23, 0
      %p134 = por %p132, %p133
      %p135 = scmp.ne.s32.totalorder %s121, %s122
      %p136 = scmp.eq.s32.totalorder %s24, 3
      %p137 = por %p135, %p136
      %p139 = scmp.ne.s32.totalorder %s122, %s138
      %p140 = scmp.eq.s32.totalorder %s24, 0
      %p141 = por %p139, %p140
      %p142 = scmp.le.s32.totalorder 1, %s18
      %p143 = scmp.lt.s32.totalorder %s18, 5
      %p144 = pnand %p142, %p143
      %p145 = pneg %p144
      // Predicated region
      $region9: #{tpu_custom_call.1} parent=5 // pred_check
        _
      $region10: #{tpu_custom_call.1} parent=5 // pred_check_branch
        %147 = sbr.rel (%p144) target = $region12
      $region11: #{tpu_custom_call.1} parent=5 // pred_region
        %s148 = ssub.s32 %s18, 1
      $region12: #{tpu_custom_call.1} parent=5 // pred_fallthru
        _
      %p149 = scmp.lt.s32.totalorder %s18, 4
      // Predicated region
      $region13: #{tpu_custom_call.1} parent=5 // pred_check
        %p150 = pneg %p149
      $region14: #{tpu_custom_call.1} parent=5 // pred_check_branch
        %152 = sbr.rel (%p150) target = $region16
      $region15: #{tpu_custom_call.1} parent=5 // pred_region
        // Predicated region
        $region17: #{tpu_custom_call.1} parent=15 // pred_check
          %p153 = pneg %p50
        $region18: #{tpu_custom_call.1} parent=15 // pred_check_branch
          %155 = sbr.rel (%p153) target = $region20
        $region19: #{tpu_custom_call.1} parent=15 // pred_region
          %s156 = sand.u32 %s40, 1
          %s157 = scalar_lea.sflag [#allocation4], %s156
          %s158 = sand.u32 %s40, 1
          %s159 = smul.addr %s158, 256
          %s160 = scalar_lea.vmem [#allocation3], %s159
          %s161 = smul.u32 16, %s25
          %s163 = ssub.s32 4096, 4096
          %164 = vsyncadd %s157, %s163
          %s165 = smul.addr %s161, 2
          %s166 = smul.addr %s165, 128
          %s167 = scalar_lea.hbm %s0, %s166
          %s168 = sshll.u32 %s160, 4
          %s169 = int_to_ptr.vmem [resolvable:$true] %s168
          %174 = dma.hbm_to_vmem [thread:$0]  %s167, 4096, %s169, %s157, 256, 256, 16
        $region20: #{tpu_custom_call.1} parent=15 // pred_fallthru
          _
        // Predicated region
        $region21: #{tpu_custom_call.1} parent=15 // pred_check
          %p175 = pneg %p76
        $region22: #{tpu_custom_call.1} parent=15 // pred_check_branch
          %177 = sbr.rel (%p175) target = $region24
        $region23: #{tpu_custom_call.1} parent=15 // pred_region
          %s178 = sand.u32 %s18, 1
          %s179 = scalar_lea.sflag [#allocation7], %s178
          %s180 = sand.u32 %s66, 1
          %s181 = smul.addr %s180, 1024
          %s182 = scalar_lea.vmem [#allocation6], %s181
          %s183 = smul.u32 4, %s26
          %s185 = ssub.s32 16384, 16384
          %186 = vsyncadd %s179, %s185
          %s187 = smul.addr %s183, 128
          %s188 = scalar_lea.hbm %s1, %s187
          %s189 = sshll.u32 %s182, 4
          %s190 = int_to_ptr.vmem [resolvable:$true] %s189
          %195 = dma.hbm_to_vmem [thread:$0]  %s188, 16384, %s190, %s179, 1024, 512, 32
        $region24: #{tpu_custom_call.1} parent=15 // pred_fallthru
          _
        // Predicated region
        $region25: #{tpu_custom_call.1} parent=15 // pred_check
          %p196 = pneg %p102
        $region26: #{tpu_custom_call.1} parent=15 // pred_check_branch
          %198 = sbr.rel (%p196) target = $region28
        $region27: #{tpu_custom_call.1} parent=15 // pred_region
          %s199 = sand.u32 %s18, 1
          %s200 = scalar_lea.sflag [#allocation7], %s199
          %s201 = sand.u32 %s92, 1
          %s202 = smul.addr %s201, 512
          %s203 = scalar_lea.vmem [#allocation8], %s202
          %s204 = smul.u32 32, %s26
          %s206 = ssub.s32 8192, 8192
          %207 = vsyncadd %s200, %s206
          %s208 = smul.addr %s204, 2
          %s209 = smul.addr %s208, 128
          %s210 = scalar_lea.hbm %s2, %s209
          %s211 = sshll.u32 %s203, 4
          %s212 = int_to_ptr.vmem [resolvable:$true] %s211
          %217 = dma.hbm_to_vmem [thread:$0]  %s210, 8192, %s212, %s200, 256, 256, 16
        $region28: #{tpu_custom_call.1} parent=15 // pred_fallthru
          _
      $region16: #{tpu_custom_call.1} parent=5 // pred_fallthru
        _
      %p218 = scmp.le.s32.totalorder 1, %s18
      %p219 = scmp.lt.s32.totalorder %s18, 5
      %p220 = pnand %p218, %p219
      %p221 = pneg %p220
      // Predicated region
      $region29: #{tpu_custom_call.1} parent=5 // pred_check
        _
      $region30: #{tpu_custom_call.1} parent=5 // pred_check_branch
        %223 = sbr.rel (%p220) target = $region32
      $region31: #{tpu_custom_call.1} parent=5 // pred_region
        %s224 = ssub.s32 %s18, 1
        %s225 = sand.u32 %s43, 1
        %s226 = scalar_lea.sflag [#allocation4], %s225
        %s227 = sand.u32 %s43, 1
        %s228 = smul.addr %s227, 256
        %s229 = scalar_lea.vmem [#allocation3], %s228
        // Predicated region
        $region33: #{tpu_custom_call.1} parent=31 // pred_check
          %p230 = pneg %p56
        $region34: #{tpu_custom_call.1} parent=31 // pred_check_branch
          %232 = sbr.rel (%p230) target = $region36
        $region35: #{tpu_custom_call.1} parent=31 // pred_region
          %233 = dma.done %s226, 4096
        $region36: #{tpu_custom_call.1} parent=31 // pred_fallthru
          _
        %s234 = sand.u32 %s23, 1
        %s235 = scalar_lea.sflag [#allocation7], %s234
        %s236 = sand.u32 %s69, 1
        %s237 = smul.addr %s236, 1024
        %s238 = scalar_lea.vmem [#allocation6], %s237
        // Predicated region
        $region37: #{tpu_custom_call.1} parent=31 // pred_check
          %p239 = pneg %p82
        $region38: #{tpu_custom_call.1} parent=31 // pred_check_branch
          %241 = sbr.rel (%p239) target = $region40
        $region39: #{tpu_custom_call.1} parent=31 // pred_region
          %242 = dma.done %s235, 16384
        $region40: #{tpu_custom_call.1} parent=31 // pred_fallthru
          _
        %s243 = sand.u32 %s23, 1
        %s244 = scalar_lea.sflag [#allocation7], %s243
        %s245 = sand.u32 %s95, 1
        %s246 = smul.addr %s245, 512
        %s247 = scalar_lea.vmem [#allocation8], %s246
        // Predicated region
        $region41: #{tpu_custom_call.1} parent=31 // pred_check
          %p248 = pneg %p108
        $region42: #{tpu_custom_call.1} parent=31 // pred_check_branch
          %250 = sbr.rel (%p248) target = $region44
        $region43: #{tpu_custom_call.1} parent=31 // pred_region
          %251 = dma.done %s244, 8192
        $region44: #{tpu_custom_call.1} parent=31 // pred_fallthru
          _
        %s252 = sand.u32 %s43, 1
        %s253 = scalar_lea.sflag [#allocation4], %s252
        %s254 = sand.u32 %s43, 1
        %s255 = smul.addr %s254, 256
        %s256 = scalar_lea.vmem [#allocation3], %s255
        %p257 = pneg %p56
        %p258 = pneg %p53
        %s259 = sand.u32 %s23, 1
        %s260 = scalar_lea.sflag [#allocation7], %s259
        %s261 = sand.u32 %s69, 1
        %s262 = smul.addr %s261, 1024
        %s263 = scalar_lea.vmem [#allocation6], %s262
        %p264 = pneg %p82
        %p265 = pneg %p79
        %s266 = sand.u32 %s23, 1
        %s267 = scalar_lea.sflag [#allocation7], %s266
        %s268 = sand.u32 %s95, 1
        %s269 = smul.addr %s268, 512
        %s270 = scalar_lea.vmem [#allocation8], %s269
        %p271 = pneg %p108
        %p272 = pneg %p105
        %p273 = pneg %p134
        %p274 = pneg %p131
        %s275 = sand.u32 %s121, 1
        %s276 = scalar_lea.sflag [#allocation5], %s275
        %s277 = sand.u32 %s121, 1
        %s278 = smul.addr %s277, 256
        %s279 = scalar_lea.vmem [#allocation9], %s278
        %s280 = smul.u32 16, %s27
        %s281 = smul.u32 4, %s28
        %s282 = smul.u32 32, %s28
        %s283 = smul.u32 16, %s27
        %p284 = scmp.eq.s32.totalorder %s28, 0
        // Predicated region
        $region45: #{tpu_custom_call.1} parent=31 // pred_check
          %p285 = pneg %p284
        $region46: #{tpu_custom_call.1} parent=31 // pred_check_branch
          %287 = sbr.rel (%p285) target = $region48
        $region47: #{tpu_custom_call.1} parent=31 // pred_region
          %288 = vst [vmem:[#allocation2] sm:$0xff] 0.0
          %289 = vst [vmem:[#allocation2 + $0x8] sm:$0xff] 0.0
          %290 = vst [vmem:[#allocation2 + $0x10] sm:$0xff] 0.0
          %291 = vst [vmem:[#allocation2 + $0x18] sm:$0xff] 0.0
          %292 = vst [vmem:[#allocation2 + $0x20] sm:$0xff] 0.0
          %293 = vst [vmem:[#allocation2 + $0x28] sm:$0xff] 0.0
          %294 = vst [vmem:[#allocation2 + $0x30] sm:$0xff] 0.0
          %295 = vst [vmem:[#allocation2 + $0x38] sm:$0xff] 0.0
          %296 = vst [vmem:[#allocation2 + $0x40] sm:$0xff] 0.0
          %297 = vst [vmem:[#allocation2 + $0x48] sm:$0xff] 0.0
          %298 = vst [vmem:[#allocation2 + $0x50] sm:$0xff] 0.0
          %299 = vst [vmem:[#allocation2 + $0x58] sm:$0xff] 0.0
          %300 = vst [vmem:[#allocation2 + $0x60] sm:$0xff] 0.0
          %301 = vst [vmem:[#allocation2 + $0x68] sm:$0xff] 0.0
          %302 = vst [vmem:[#allocation2 + $0x70] sm:$0xff] 0.0
          %303 = vst [vmem:[#allocation2 + $0x78] sm:$0xff] 0.0
          %304 = vst [vmem:[#allocation2 + $0x80] sm:$0xff] 0.0
          %305 = vst [vmem:[#allocation2 + $0x88] sm:$0xff] 0.0
          %306 = vst [vmem:[#allocation2 + $0x90] sm:$0xff] 0.0
          %307 = vst [vmem:[#allocation2 + $0x98] sm:$0xff] 0.0
          %308 = vst [vmem:[#allocation2 + $0xa0] sm:$0xff] 0.0
          %309 = vst [vmem:[#allocation2 + $0xa8] sm:$0xff] 0.0
          %310 = vst [vmem:[#allocation2 + $0xb0] sm:$0xff] 0.0
          %311 = vst [vmem:[#allocation2 + $0xb8] sm:$0xff] 0.0
          %312 = vst [vmem:[#allocation2 + $0xc0] sm:$0xff] 0.0
          %313 = vst [vmem:[#allocation2 + $0xc8] sm:$0xff] 0.0
          %314 = vst [vmem:[#allocation2 + $0xd0] sm:$0xff] 0.0
          %315 = vst [vmem:[#allocation2 + $0xd8] sm:$0xff] 0.0
          %316 = vst [vmem:[#allocation2 + $0xe0] sm:$0xff] 0.0
          %317 = vst [vmem:[#allocation2 + $0xe8] sm:$0xff] 0.0
          %318 = vst [vmem:[#allocation2 + $0xf0] sm:$0xff] 0.0
          %319 = vst [vmem:[#allocation2 + $0xf8] sm:$0xff] 0.0
        $region48: #{tpu_custom_call.1} parent=31 // pred_fallthru
          _
        %v320 = vld [vmem:[%s229] sm:$0xff]
        %v321 = vld [vmem:[%s229 + $0x8] sm:$0xff]
        %v322 = vld [vmem:[%s229 + $0x10] sm:$0xff]
        %v323 = vld [vmem:[%s229 + $0x18] sm:$0xff]
        %v324 = vld [vmem:[%s229 + $0x20] sm:$0xff]
        %v325 = vld [vmem:[%s229 + $0x28] sm:$0xff]
        %v326 = vld [vmem:[%s229 + $0x30] sm:$0xff]
        %v327 = vld [vmem:[%s229 + $0x38] sm:$0xff]
        %v328 = vld [vmem:[%s229 + $0x40] sm:$0xff]
        %v329 = vld [vmem:[%s229 + $0x48] sm:$0xff]
        %v330 = vld [vmem:[%s229 + $0x50] sm:$0xff]
        %v331 = vld [vmem:[%s229 + $0x58] sm:$0xff]
        %v332 = vld [vmem:[%s229 + $0x60] sm:$0xff]
        %v333 = vld [vmem:[%s229 + $0x68] sm:$0xff]
        %v334 = vld [vmem:[%s229 + $0x70] sm:$0xff]
        %v335 = vld [vmem:[%s229 + $0x78] sm:$0xff]
        %v336 = vld [vmem:[%s229 + $0x80] sm:$0xff]
        %v337 = vld [vmem:[%s229 + $0x88] sm:$0xff]
        %v338 = vld [vmem:[%s229 + $0x90] sm:$0xff]
        %v339 = vld [vmem:[%s229 + $0x98] sm:$0xff]
        %v340 = vld [vmem:[%s229 + $0xa0] sm:$0xff]
        %v341 = vld [vmem:[%s229 + $0xa8] sm:$0xff]
        %v342 = vld [vmem:[%s229 + $0xb0] sm:$0xff]
        %v343 = vld [vmem:[%s229 + $0xb8] sm:$0xff]
        %v344 = vld [vmem:[%s229 + $0xc0] sm:$0xff]
        %v345 = vld [vmem:[%s229 + $0xc8] sm:$0xff]
        %v346 = vld [vmem:[%s229 + $0xd0] sm:$0xff]
        %v347 = vld [vmem:[%s229 + $0xd8] sm:$0xff]
        %v348 = vld [vmem:[%s229 + $0xe0] sm:$0xff]
        %v349 = vld [vmem:[%s229 + $0xe8] sm:$0xff]
        %v350 = vld [vmem:[%s229 + $0xf0] sm:$0xff]
        %v351 = vld [vmem:[%s229 + $0xf8] sm:$0xff]
        %v352 = vld [vmem:[%s238] sm:$0xff]
        %v353 = vld [vmem:[%s238 + $0x8] sm:$0xff]
        %v354 = vld [vmem:[%s238 + $0x10] sm:$0xff]
        %v355 = vld [vmem:[%s238 + $0x18] sm:$0xff]
        %v356 = vld [vmem:[%s238 + $0x20] sm:$0xff]
        %v357 = vld [vmem:[%s238 + $0x28] sm:$0xff]
        %v358 = vld [vmem:[%s238 + $0x30] sm:$0xff]
        %v359 = vld [vmem:[%s238 + $0x38] sm:$0xff]
        %v360 = vld [vmem:[%s238 + $0x40] sm:$0xff]
        %v361 = vld [vmem:[%s238 + $0x48] sm:$0xff]
        %v362 = vld [vmem:[%s238 + $0x50] sm:$0xff]
        %v363 = vld [vmem:[%s238 + $0x58] sm:$0xff]
        %v364 = vld [vmem:[%s238 + $0x60] sm:$0xff]
        %v365 = vld [vmem:[%s238 + $0x68] sm:$0xff]
        %v366 = vld [vmem:[%s238 + $0x70] sm:$0xff]
        %v367 = vld [vmem:[%s238 + $0x78] sm:$0xff]
        %v368 = vld [vmem:[%s238 + $0x80] sm:$0xff]
        %v369 = vld [vmem:[%s238 + $0x88] sm:$0xff]
        %v370 = vld [vmem:[%s238 + $0x90] sm:$0xff]
        %v371 = vld [vmem:[%s238 + $0x98] sm:$0xff]
        %v372 = vld [vmem:[%s238 + $0xa0] sm:$0xff]
        %v373 = vld [vmem:[%s238 + $0xa8] sm:$0xff]
        %v374 = vld [vmem:[%s238 + $0xb0] sm:$0xff]
        %v375 = vld [vmem:[%s238 + $0xb8] sm:$0xff]
        %v376 = vld [vmem:[%s238 + $0xc0] sm:$0xff]
        %v377 = vld [vmem:[%s238 + $0xc8] sm:$0xff]
        %v378 = vld [vmem:[%s238 + $0xd0] sm:$0xff]
        %v379 = vld [vmem:[%s238 + $0xd8] sm:$0xff]
        %v380 = vld [vmem:[%s238 + $0xe0] sm:$0xff]
        %v381 = vld [vmem:[%s238 + $0xe8] sm:$0xff]
        %v382 = vld [vmem:[%s238 + $0xf0] sm:$0xff]
        %v383 = vld [vmem:[%s238 + $0xf8] sm:$0xff]
        %v384 = vld [vmem:[%s238 + $0x100] sm:$0xff]
        %v385 = vld [vmem:[%s238 + $0x108] sm:$0xff]
        %v386 = vld [vmem:[%s238 + $0x110] sm:$0xff]
        %v387 = vld [vmem:[%s238 + $0x118] sm:$0xff]
        %v388 = vld [vmem:[%s238 + $0x120] sm:$0xff]
        %v389 = vld [vmem:[%s238 + $0x128] sm:$0xff]
        %v390 = vld [vmem:[%s238 + $0x130] sm:$0xff]
        %v391 = vld [vmem:[%s238 + $0x138] sm:$0xff]
        %v392 = vld [vmem:[%s238 + $0x140] sm:$0xff]
        %v393 = vld [vmem:[%s238 + $0x148] sm:$0xff]
        %v394 = vld [vmem:[%s238 + $0x150] sm:$0xff]
        %v395 = vld [vmem:[%s238 + $0x158] sm:$0xff]
        %v396 = vld [vmem:[%s238 + $0x160] sm:$0xff]
        %v397 = vld [vmem:[%s238 + $0x168] sm:$0xff]
        %v398 = vld [vmem:[%s238 + $0x170] sm:$0xff]
        %v399 = vld [vmem:[%s238 + $0x178] sm:$0xff]
        %v400 = vld [vmem:[%s238 + $0x180] sm:$0xff]
        %v401 = vld [vmem:[%s238 + $0x188] sm:$0xff]
        %v402 = vld [vmem:[%s238 + $0x190] sm:$0xff]
        %v403 = vld [vmem:[%s238 + $0x198] sm:$0xff]
        %v404 = vld [vmem:[%s238 + $0x1a0] sm:$0xff]
        %v405 = vld [vmem:[%s238 + $0x1a8] sm:$0xff]
        %v406 = vld [vmem:[%s238 + $0x1b0] sm:$0xff]
        %v407 = vld [vmem:[%s238 + $0x1b8] sm:$0xff]
        %v408 = vld [vmem:[%s238 + $0x1c0] sm:$0xff]
        %v409 = vld [vmem:[%s238 + $0x1c8] sm:$0xff]
        %v410 = vld [vmem:[%s238 + $0x1d0] sm:$0xff]
        %v411 = vld [vmem:[%s238 + $0x1d8] sm:$0xff]
        %v412 = vld [vmem:[%s238 + $0x1e0] sm:$0xff]
        %v413 = vld [vmem:[%s238 + $0x1e8] sm:$0xff]
        %v414 = vld [vmem:[%s238 + $0x1f0] sm:$0xff]
        %v415 = vld [vmem:[%s238 + $0x1f8] sm:$0xff]
        %v416 = vld [vmem:[%s238 + $0x200] sm:$0xff]
        %v417 = vld [vmem:[%s238 + $0x208] sm:$0xff]
        %v418 = vld [vmem:[%s238 + $0x210] sm:$0xff]
        %v419 = vld [vmem:[%s238 + $0x218] sm:$0xff]
        %v420 = vld [vmem:[%s238 + $0x220] sm:$0xff]
        %v421 = vld [vmem:[%s238 + $0x228] sm:$0xff]
        %v422 = vld [vmem:[%s238 + $0x230] sm:$0xff]
        %v423 = vld [vmem:[%s238 + $0x238] sm:$0xff]
        %v424 = vld [vmem:[%s238 + $0x240] sm:$0xff]
        %v425 = vld [vmem:[%s238 + $0x248] sm:$0xff]
        %v426 = vld [vmem:[%s238 + $0x250] sm:$0xff]
        %v427 = vld [vmem:[%s238 + $0x258] sm:$0xff]
        %v428 = vld [vmem:[%s238 + $0x260] sm:$0xff]
        %v429 = vld [vmem:[%s238 + $0x268] sm:$0xff]
        %v430 = vld [vmem:[%s238 + $0x270] sm:$0xff]
        %v431 = vld [vmem:[%s238 + $0x278] sm:$0xff]
        %v432 = vld [vmem:[%s238 + $0x280] sm:$0xff]
        %v433 = vld [vmem:[%s238 + $0x288] sm:$0xff]
        %v434 = vld [vmem:[%s238 + $0x290] sm:$0xff]
        %v435 = vld [vmem:[%s238 + $0x298] sm:$0xff]
        %v436 = vld [vmem:[%s238 + $0x2a0] sm:$0xff]
        %v437 = vld [vmem:[%s238 + $0x2a8] sm:$0xff]
        %v438 = vld [vmem:[%s238 + $0x2b0] sm:$0xff]
        %v439 = vld [vmem:[%s238 + $0x2b8] sm:$0xff]
        %v440 = vld [vmem:[%s238 + $0x2c0] sm:$0xff]
        %v441 = vld [vmem:[%s238 + $0x2c8] sm:$0xff]
        %v442 = vld [vmem:[%s238 + $0x2d0] sm:$0xff]
        %v443 = vld [vmem:[%s238 + $0x2d8] sm:$0xff]
        %v444 = vld [vmem:[%s238 + $0x2e0] sm:$0xff]
        %v445 = vld [vmem:[%s238 + $0x2e8] sm:$0xff]
        %v446 = vld [vmem:[%s238 + $0x2f0] sm:$0xff]
        %v447 = vld [vmem:[%s238 + $0x2f8] sm:$0xff]
        %v448 = vld [vmem:[%s238 + $0x300] sm:$0xff]
        %v449 = vld [vmem:[%s238 + $0x308] sm:$0xff]
        %v450 = vld [vmem:[%s238 + $0x310] sm:$0xff]
        %v451 = vld [vmem:[%s238 + $0x318] sm:$0xff]
        %v452 = vld [vmem:[%s238 + $0x320] sm:$0xff]
        %v453 = vld [vmem:[%s238 + $0x328] sm:$0xff]
        %v454 = vld [vmem:[%s238 + $0x330] sm:$0xff]
        %v455 = vld [vmem:[%s238 + $0x338] sm:$0xff]
        %v456 = vld [vmem:[%s238 + $0x340] sm:$0xff]
        %v457 = vld [vmem:[%s238 + $0x348] sm:$0xff]
        %v458 = vld [vmem:[%s238 + $0x350] sm:$0xff]
        %v459 = vld [vmem:[%s238 + $0x358] sm:$0xff]
        %v460 = vld [vmem:[%s238 + $0x360] sm:$0xff]
        %v461 = vld [vmem:[%s238 + $0x368] sm:$0xff]
        %v462 = vld [vmem:[%s238 + $0x370] sm:$0xff]
        %v463 = vld [vmem:[%s238 + $0x378] sm:$0xff]
        %v464 = vld [vmem:[%s238 + $0x380] sm:$0xff]
        %v465 = vld [vmem:[%s238 + $0x388] sm:$0xff]
        %v466 = vld [vmem:[%s238 + $0x390] sm:$0xff]
        %v467 = vld [vmem:[%s238 + $0x398] sm:$0xff]
        %v468 = vld [vmem:[%s238 + $0x3a0] sm:$0xff]
        %v469 = vld [vmem:[%s238 + $0x3a8] sm:$0xff]
        %v470 = vld [vmem:[%s238 + $0x3b0] sm:$0xff]
        %v471 = vld [vmem:[%s238 + $0x3b8] sm:$0xff]
        %v472 = vld [vmem:[%s238 + $0x3c0] sm:$0xff]
        %v473 = vld [vmem:[%s238 + $0x3c8] sm:$0xff]
        %v474 = vld [vmem:[%s238 + $0x3d0] sm:$0xff]
        %v475 = vld [vmem:[%s238 + $0x3d8] sm:$0xff]
        %v476 = vld [vmem:[%s238 + $0x3e0] sm:$0xff]
        %v477 = vld [vmem:[%s238 + $0x3e8] sm:$0xff]
        %v478 = vld [vmem:[%s238 + $0x3f0] sm:$0xff]
        %v479 = vld [vmem:[%s238 + $0x3f8] sm:$0xff]
        %480 = vmatprep.subr.mxu0 %v353
        %481 = vmatpush1.msra.mxu0 %v352
        %482 = vmatprep.subr.mxu0 %v357
        %483 = vmatpush1.msra.mxu0 %v356
        %484 = vmatprep.subr.mxu0 %v361
        %485 = vmatpush1.msra.mxu0 %v360
        %486 = vmatprep.subr.mxu0 %v365
        %487 = vmatpush1.msra.mxu0 %v364
        %488 = vmatprep.subr.mxu0 %v369
        %489 = vmatpush1.msra.mxu0 %v368
        %490 = vmatprep.subr.mxu0 %v373
        %491 = vmatpush1.msra.mxu0 %v372
        %492 = vmatprep.subr.mxu0 %v377
        %493 = vmatpush1.msra.mxu0 %v376
        %494 = vmatprep.subr.mxu0 %v381
        %495 = vmatpush1.msra.mxu0 %v380
        %496 = vmatprep.subr.mxu0 %v385
        %497 = vmatpush1.msra.mxu0 %v384
        %498 = vmatprep.subr.mxu0 %v389
        %499 = vmatpush1.msra.mxu0 %v388
        %500 = vmatprep.subr.mxu0 %v393
        %501 = vmatpush1.msra.mxu0 %v392
        %502 = vmatprep.subr.mxu0 %v397
        %503 = vmatpush1.msra.mxu0 %v396
        %504 = vmatprep.subr.mxu0 %v401
        %505 = vmatpush1.msra.mxu0 %v400
        %506 = vmatprep.subr.mxu0 %v405
        %507 = vmatpush1.msra.mxu0 %v404
        %508 = vmatprep.subr.mxu0 %v409
        %509 = vmatpush1.msra.mxu0 %v408
        %510 = vmatprep.subr.mxu0 %v413
        %511 = vmatpush1.msra.mxu0 %v412
        %512 = vmatprep.subr.mxu0 %v417
        %513 = vmatpush1.msra.mxu0 %v416
        %514 = vmatprep.subr.mxu0 %v421
        %515 = vmatpush1.msra.mxu0 %v420
        %516 = vmatprep.subr.mxu0 %v425
        %517 = vmatpush1.msra.mxu0 %v424
        %518 = vmatprep.subr.mxu0 %v429
        %519 = vmatpush1.msra.mxu0 %v428
        %520 = vmatprep.subr.mxu0 %v433
        %521 = vmatpush1.msra.mxu0 %v432
        %522 = vmatprep.subr.mxu0 %v437
        %523 = vmatpush1.msra.mxu0 %v436
        %524 = vmatprep.subr.mxu0 %v441
        %525 = vmatpush1.msra.mxu0 %v440
        %526 = vmatprep.subr.mxu0 %v445
        %527 = vmatpush1.msra.mxu0 %v444
        %528 = vmatprep.subr.mxu0 %v449
        %529 = vmatpush1.msra.mxu0 %v448
        %530 = vmatprep.subr.mxu0 %v453
        %531 = vmatpush1.msra.mxu0 %v452
        %532 = vmatprep.subr.mxu0 %v457
        %533 = vmatpush1.msra.mxu0 %v456
        %534 = vmatprep.subr.mxu0 %v461
        %535 = vmatpush1.msra.mxu0 %v460
        %536 = vmatprep.subr.mxu0 %v465
        %537 = vmatpush1.msra.mxu0 %v464
        %538 = vmatprep.subr.mxu0 %v469
        %539 = vmatpush1.msra.mxu0 %v468
        %540 = vmatprep.subr.mxu0 %v473
        %541 = vmatpush1.msra.mxu0 %v472
        %542 = vmatprep.subr.mxu0 %v477
        %543 = vmatpush1.msra.mxu0 %v476
        %544 = vmatprep.mubr.f32.mxu0 %v321
        %545 = vmatmul.mubr.f32.gmra.mrb[0].mxu0 %v320
        %v546 = vpop.f32.mrb[0].mxu0
        %v547 = vadd.f32 0.0, %v546
        %v548 = vpop.f32.mrb[0].mxu0
        %v549 = vadd.f32 0.0, %v548
        %550 = vmatprep.mubr.f32.mxu0 %v323
        %551 = vmatmul.mubr.f32.gmra.mrb[0].mxu0 %v322
        %v552 = vpop.f32.mrb[0].mxu0
        %v553 = vadd.f32 0.0, %v552
        %v554 = vpop.f32.mrb[0].mxu0
        %v555 = vadd.f32 0.0, %v554
        %556 = vmatprep.mubr.f32.mxu0 %v325
        %557 = vmatmul.mubr.f32.gmra.mrb[0].mxu0 %v324
        %v558 = vpop.f32.mrb[0].mxu0
        %v559 = vadd.f32 0.0, %v558
        %v560 = vpop.f32.mrb[0].mxu0
        %v561 = vadd.f32 0.0, %v560
        %562 = vmatprep.mubr.f32.mxu0 %v327
        %563 = vmatmul.mubr.f32.gmra.mrb[0].mxu0 %v326
        %v564 = vpop.f32.mrb[0].mxu0
        %v565 = vadd.f32 0.0, %v564
        %v566 = vpop.f32.mrb[0].mxu0
        %v567 = vadd.f32 0.0, %v566
        %568 = vmatprep.mubr.f32.mxu0 %v329
        %569 = vmatmul.mubr.f32.gmra.mrb[0].mxu0 %v328
        %v570 = vpop.f32.mrb[0].mxu0
        %v571 = vadd.f32 0.0, %v570
        %v572 = vpop.f32.mrb[0].mxu0
        %v573 = vadd.f32 0.0, %v572
        %574 = vmatprep.mubr.f32.mxu0 %v331
        %575 = vmatmul.mubr.f32.gmra.mrb[0].mxu0 %v330
        %v576 = vpop.f32.mrb[0].mxu0
        %v577 = vadd.f32 0.0, %v576
        %v578 = vpop.f32.mrb[0].mxu0
        %v579 = vadd.f32 0.0, %v578
        %580 = vmatprep.mubr.f32.mxu0 %v333
        %581 = vmatmul.mubr.f32.gmra.mrb[0].mxu0 %v332
        %v582 = vpop.f32.mrb[0].mxu0
        %v583 = vadd.f32 0.0, %v582
        %v584 = vpop.f32.mrb[0].mxu0
        %v585 = vadd.f32 0.0, %v584
        %586 = vmatprep.mubr.f32.mxu0 %v335
        %587 = vmatmul.mubr.f32.gmra.mrb[0].mxu0 %v334
        %v588 = vpop.f32.mrb[0].mxu0
        %v589 = vadd.f32 0.0, %v588
        %v590 = vpop.f32.mrb[0].mxu0
        %v591 = vadd.f32 0.0, %v590
        %592 = vmatprep.mubr.f32.mxu0 %v337
        %593 = vmatmul.mubr.f32.gmra.mrb[0].mxu0 %v336
        %v594 = vpop.f32.mrb[0].mxu0
        %v595 = vadd.f32 0.0, %v594
        %v596 = vpop.f32.mrb[0].mxu0
        %v597 = vadd.f32 0.0, %v596
        %598 = vmatprep.mubr.f32.mxu0 %v339
        %599 = vmatmul.mubr.f32.gmra.mrb[0].mxu0 %v338
        %v600 = vpop.f32.mrb[0].mxu0
        %v601 = vadd.f32 0.0, %v600
        %v602 = vpop.f32.mrb[0].mxu0
        %v603 = vadd.f32 0.0, %v602
        %604 = vmatprep.mubr.f32.mxu0 %v341
        %605 = vmatmul.mubr.f32.gmra.mrb[0].mxu0 %v340
        %v606 = vpop.f32.mrb[0].mxu0
        %v607 = vadd.f32 0.0, %v606
        %v608 = vpop.f32.mrb[0].mxu0
        %v609 = vadd.f32 0.0, %v608
        %610 = vmatprep.mubr.f32.mxu0 %v343
        %611 = vmatmul.mubr.f32.gmra.mrb[0].mxu0 %v342
        %v612 = vpop.f32.mrb[0].mxu0
        %v613 = vadd.f32 0.0, %v612
        %v614 = vpop.f32.mrb[0].mxu0
        %v615 = vadd.f32 0.0, %v614
        %616 = vmatprep.mubr.f32.mxu0 %v345
        %617 = vmatmul.mubr.f32.gmra.mrb[0].mxu0 %v344
        %v618 = vpop.f32.mrb[0].mxu0
        %v619 = vadd.f32 0.0, %v618
        %v620 = vpop.f32.mrb[0].mxu0
        %v621 = vadd.f32 0.0, %v620
        %622 = vmatprep.mubr.f32.mxu0 %v347
        %623 = vmatmul.mubr.f32.gmra.mrb[0].mxu0 %v346
        %v624 = vpop.f32.mrb[0].mxu0
        %v625 = vadd.f32 0.0, %v624
        %v626 = vpop.f32.mrb[0].mxu0
        %v627 = vadd.f32 0.0, %v626
        %628 = vmatprep.mubr.f32.mxu0 %v349
        %629 = vmatmul.mubr.f32.gmra.mrb[0].mxu0 %v348
        %v630 = vpop.f32.mrb[0].mxu0
        %v631 = vadd.f32 0.0, %v630
        %v632 = vpop.f32.mrb[0].mxu0
        %v633 = vadd.f32 0.0, %v632
        %634 = vmatprep.mubr.f32.mxu0 %v351
        %635 = vmatmul.mubr.f32.gmra.mrb[0].mxu0 %v350
        %v636 = vpop.f32.mrb[0].mxu0
        %v637 = vadd.f32 0.0, %v636
        %v638 = vpop.f32.mrb[0].mxu0
        %v639 = vadd.f32 0.0, %v638
        %640 = vdwg.mxu0
        %641 = vmatprep.subr.mxu0 %v355
        %642 = vmatpush1.msra.mxu0 %v354
        %643 = vmatprep.subr.mxu0 %v359
        %644 = vmatpush1.msra.mxu0 %v358
        %645 = vmatprep.subr.mxu0 %v363
        %646 = vmatpush1.msra.mxu0 %v362
        %647 = vmatprep.subr.mxu0 %v367
        %648 = vmatpush1.msra.mxu0 %v366
        %649 = vmatprep.subr.mxu0 %v371
        %650 = vmatpush1.msra.mxu0 %v370
        %651 = vmatprep.subr.mxu0 %v375
        %652 = vmatpush1.msra.mxu0 %v374
        %653 = vmatprep.subr.mxu0 %v379
        %654 = vmatpush1.msra.mxu0 %v378
        %655 = vmatprep.subr.mxu0 %v383
        %656 = vmatpush1.msra.mxu0 %v382
        %657 = vmatprep.subr.mxu0 %v387
        %658 = vmatpush1.msra.mxu0 %v386
        %659 = vmatprep.subr.mxu0 %v391
        %660 = vmatpush1.msra.mxu0 %v390
        %661 = vmatprep.subr.mxu0 %v395
        %662 = vmatpush1.msra.mxu0 %v394
        %663 = vmatprep.subr.mxu0 %v399
        %664 = vmatpush1.msra.mxu0 %v398
        %665 = vmatprep.subr.mxu0 %v403
        %666 = vmatpush1.msra.mxu0 %v402
        %667 = vmatprep.subr.mxu0 %v407
        %668 = vmatpush1.msra.mxu0 %v406
        %669 = vmatprep.subr.mxu0 %v411
        %670 = vmatpush1.msra.mxu0 %v410
        %671 = vmatprep.subr.mxu0 %v415
        %672 = vmatpush1.msra.mxu0 %v414
        %673 = vmatprep.subr.mxu0 %v419
        %674 = vmatpush1.msra.mxu0 %v418
        %675 = vmatprep.subr.mxu0 %v423
        %676 = vmatpush1.msra.mxu0 %v422
        %677 = vmatprep.subr.mxu0 %v427
        %678 = vmatpush1.msra.mxu0 %v426
        %679 = vmatprep.subr.mxu0 %v431
        %680 = vmatpush1.msra.mxu0 %v430
        %681 = vmatprep.subr.mxu0 %v435
        %682 = vmatpush1.msra.mxu0 %v434
        %683 = vmatprep.subr.mxu0 %v439
        %684 = vmatpush1.msra.mxu0 %v438
        %685 = vmatprep.subr.mxu0 %v443
        %686 = vmatpush1.msra.mxu0 %v442
        %687 = vmatprep.subr.mxu0 %v447
        %688 = vmatpush1.msra.mxu0 %v446
        %689 = vmatprep.subr.mxu0 %v451
        %690 = vmatpush1.msra.mxu0 %v450
        %691 = vmatprep.subr.mxu0 %v455
        %692 = vmatpush1.msra.mxu0 %v454
        %693 = vmatprep.subr.mxu0 %v459
        %694 = vmatpush1.msra.mxu0 %v458
        %695 = vmatprep.subr.mxu0 %v463
        %696 = vmatpush1.msra.mxu0 %v462
        %697 = vmatprep.subr.mxu0 %v467
        %698 = vmatpush1.msra.mxu0 %v466
        %699 = vmatprep.subr.mxu0 %v471
        %700 = vmatpush1.msra.mxu0 %v470
        %701 = vmatprep.subr.mxu0 %v475
        %702 = vmatpush1.msra.mxu0 %v474
        %703 = vmatprep.subr.mxu0 %v479
        %704 = vmatpush1.msra.mxu0 %v478
        %705 = vmatprep.mubr.f32.mxu0 %v321
        %706 = vmatmul.mubr.f32.gmra.mrb[0].mxu0 %v320
        %v707 = vpop.f32.mrb[0].mxu0
        %v708 = vadd.f32 0.0, %v707
        %v709 = vpop.f32.mrb[0].mxu0
        %v710 = vadd.f32 0.0, %v709
        %711 = vmatprep.mubr.f32.mxu0 %v323
        %712 = vmatmul.mubr.f32.gmra.mrb[0].mxu0 %v322
        %v713 = vpop.f32.mrb[0].mxu0
        %v714 = vadd.f32 0.0, %v713
        %v715 = vpop.f32.mrb[0].mxu0
        %v716 = vadd.f32 0.0, %v715
        %717 = vmatprep.mubr.f32.mxu0 %v325
        %718 = vmatmul.mubr.f32.gmra.mrb[0].mxu0 %v324
        %v719 = vpop.f32.mrb[0].mxu0
        %v720 = vadd.f32 0.0, %v719
        %v721 = vpop.f32.mrb[0].mxu0
        %v722 = vadd.f32 0.0, %v721
        %723 = vmatprep.mubr.f32.mxu0 %v327
        %724 = vmatmul.mubr.f32.gmra.mrb[0].mxu0 %v326
        %v725 = vpop.f32.mrb[0].mxu0
        %v726 = vadd.f32 0.0, %v725
        %v727 = vpop.f32.mrb[0].mxu0
        %v728 = vadd.f32 0.0, %v727
        %729 = vmatprep.mubr.f32.mxu0 %v329
        %730 = vmatmul.mubr.f32.gmra.mrb[0].mxu0 %v328
        %v731 = vpop.f32.mrb[0].mxu0
        %v732 = vadd.f32 0.0, %v731
        %v733 = vpop.f32.mrb[0].mxu0
        %v734 = vadd.f32 0.0, %v733
        %735 = vmatprep.mubr.f32.mxu0 %v331
        %736 = vmatmul.mubr.f32.gmra.mrb[0].mxu0 %v330
        %v737 = vpop.f32.mrb[0].mxu0
        %v738 = vadd.f32 0.0, %v737
        %v739 = vpop.f32.mrb[0].mxu0
        %v740 = vadd.f32 0.0, %v739
        %741 = vmatprep.mubr.f32.mxu0 %v333
        %742 = vmatmul.mubr.f32.gmra.mrb[0].mxu0 %v332
        %v743 = vpop.f32.mrb[0].mxu0
        %v744 = vadd.f32 0.0, %v743
        %v745 = vpop.f32.mrb[0].mxu0
        %v746 = vadd.f32 0.0, %v745
        %747 = vmatprep.mubr.f32.mxu0 %v335
        %748 = vmatmul.mubr.f32.gmra.mrb[0].mxu0 %v334
        %v749 = vpop.f32.mrb[0].mxu0
        %v750 = vadd.f32 0.0, %v749
        %v751 = vpop.f32.mrb[0].mxu0
        %v752 = vadd.f32 0.0, %v751
        %753 = vmatprep.mubr.f32.mxu0 %v337
        %754 = vmatmul.mubr.f32.gmra.mrb[0].mxu0 %v336
        %v755 = vpop.f32.mrb[0].mxu0
        %v756 = vadd.f32 0.0, %v755
        %v757 = vpop.f32.mrb[0].mxu0
        %v758 = vadd.f32 0.0, %v757
        %759 = vmatprep.mubr.f32.mxu0 %v339
        %760 = vmatmul.mubr.f32.gmra.mrb[0].mxu0 %v338
        %v761 = vpop.f32.mrb[0].mxu0
        %v762 = vadd.f32 0.0, %v761
        %v763 = vpop.f32.mrb[0].mxu0
        %v764 = vadd.f32 0.0, %v763
        %765 = vmatprep.mubr.f32.mxu0 %v341
        %766 = vmatmul.mubr.f32.gmra.mrb[0].mxu0 %v340
        %v767 = vpop.f32.mrb[0].mxu0
        %v768 = vadd.f32 0.0, %v767
        %v769 = vpop.f32.mrb[0].mxu0
        %v770 = vadd.f32 0.0, %v769
        %771 = vmatprep.mubr.f32.mxu0 %v343
        %772 = vmatmul.mubr.f32.gmra.mrb[0].mxu0 %v342
        %v773 = vpop.f32.mrb[0].mxu0
        %v774 = vadd.f32 0.0, %v773
        %v775 = vpop.f32.mrb[0].mxu0
        %v776 = vadd.f32 0.0, %v775
        %777 = vmatprep.mubr.f32.mxu0 %v345
        %778 = vmatmul.mubr.f32.gmra.mrb[0].mxu0 %v344
        %v779 = vpop.f32.mrb[0].mxu0
        %v780 = vadd.f32 0.0, %v779
        %v781 = vpop.f32.mrb[0].mxu0
        %v782 = vadd.f32 0.0, %v781
        %783 = vmatprep.mubr.f32.mxu0 %v347
        %784 = vmatmul.mubr.f32.gmra.mrb[0].mxu0 %v346
        %v785 = vpop.f32.mrb[0].mxu0
        %v786 = vadd.f32 0.0, %v785
        %v787 = vpop.f32.mrb[0].mxu0
        %v788 = vadd.f32 0.0, %v787
        %789 = vmatprep.mubr.f32.mxu0 %v349
        %790 = vmatmul.mubr.f32.gmra.mrb[0].mxu0 %v348
        %v791 = vpop.f32.mrb[0].mxu0
        %v792 = vadd.f32 0.0, %v791
        %v793 = vpop.f32.mrb[0].mxu0
        %v794 = vadd.f32 0.0, %v793
        %795 = vmatprep.mubr.f32.mxu0 %v351
        %796 = vmatmul.mubr.f32.gmra.mrb[0].mxu0 %v350
        %v797 = vpop.f32.mrb[0].mxu0
        %v798 = vadd.f32 0.0, %v797
        %v799 = vpop.f32.mrb[0].mxu0
        %v800 = vadd.f32 0.0, %v799
        %801 = vdwg.mxu0
        %v802 = vsub.f32 0.0, %v547
        %v803 = vsub.f32 0.0, %v549
        %v804 = vsub.f32 0.0, %v553
        %v805 = vsub.f32 0.0, %v555
        %v806 = vsub.f32 0.0, %v559
        %v807 = vsub.f32 0.0, %v561
        %v808 = vsub.f32 0.0, %v565
        %v809 = vsub.f32 0.0, %v567
        %v810 = vsub.f32 0.0, %v571
        %v811 = vsub.f32 0.0, %v573
        %v812 = vsub.f32 0.0, %v577
        %v813 = vsub.f32 0.0, %v579
        %v814 = vsub.f32 0.0, %v583
        %v815 = vsub.f32 0.0, %v585
        %v816 = vsub.f32 0.0, %v589
        %v817 = vsub.f32 0.0, %v591
        %v818 = vsub.f32 0.0, %v595
        %v819 = vsub.f32 0.0, %v597
        %v820 = vsub.f32 0.0, %v601
        %v821 = vsub.f32 0.0, %v603
        %v822 = vsub.f32 0.0, %v607
        %v823 = vsub.f32 0.0, %v609
        %v824 = vsub.f32 0.0, %v613
        %v825 = vsub.f32 0.0, %v615
        %v826 = vsub.f32 0.0, %v619
        %v827 = vsub.f32 0.0, %v621
        %v828 = vsub.f32 0.0, %v625
        %v829 = vsub.f32 0.0, %v627
        %v830 = vsub.f32 0.0, %v631
        %v831 = vsub.f32 0.0, %v633
        %v832 = vsub.f32 0.0, %v637
        %v833 = vsub.f32 0.0, %v639
        %v834 = vmul.f32 %v802, 1.442695
        %v835 = vpow.pop %v834
        %v836 = vmul.f32 %v803, 1.442695
        %v837 = vpow.pop %v836
        %v838 = vmul.f32 %v804, 1.442695
        %v839 = vpow.pop %v838
        %v840 = vmul.f32 %v805, 1.442695
        %v841 = vpow.pop %v840
        %v842 = vmul.f32 %v806, 1.442695
        %v843 = vpow.pop %v842
        %v844 = vmul.f32 %v807, 1.442695
        %v845 = vpow.pop %v844
        %v846 = vmul.f32 %v808, 1.442695
        %v847 = vpow.pop %v846
        %v848 = vmul.f32 %v809, 1.442695
        %v849 = vpow.pop %v848
        %v850 = vmul.f32 %v810, 1.442695
        %v851 = vpow.pop %v850
        %v852 = vmul.f32 %v811, 1.442695
        %v853 = vpow.pop %v852
        %v854 = vmul.f32 %v812, 1.442695
        %v855 = vpow.pop %v854
        %v856 = vmul.f32 %v813, 1.442695
        %v857 = vpow.pop %v856
        %v858 = vmul.f32 %v814, 1.442695
        %v859 = vpow.pop %v858
        %v860 = vmul.f32 %v815, 1.442695
        %v861 = vpow.pop %v860
        %v862 = vmul.f32 %v816, 1.442695
        %v863 = vpow.pop %v862
        %v864 = vmul.f32 %v817, 1.442695
        %v865 = vpow.pop %v864
        %v866 = vmul.f32 %v818, 1.442695
        %v867 = vpow.pop %v866
        %v868 = vmul.f32 %v819, 1.442695
        %v869 = vpow.pop %v868
        %v870 = vmul.f32 %v820, 1.442695
        %v871 = vpow.pop %v870
        %v872 = vmul.f32 %v821, 1.442695
        %v873 = vpow.pop %v872
        %v874 = vmul.f32 %v822, 1.442695
        %v875 = vpow.pop %v874
        %v876 = vmul.f32 %v823, 1.442695
        %v877 = vpow.pop %v876
        %v878 = vmul.f32 %v824, 1.442695
        %v879 = vpow.pop %v878
        %v880 = vmul.f32 %v825, 1.442695
        %v881 = vpow.pop %v880
        %v882 = vmul.f32 %v826, 1.442695
        %v883 = vpow.pop %v882
        %v884 = vmul.f32 %v827, 1.442695
        %v885 = vpow.pop %v884
        %v886 = vmul.f32 %v828, 1.442695
        %v887 = vpow.pop %v886
        %v888 = vmul.f32 %v829, 1.442695
        %v889 = vpow.pop %v888
        %v890 = vmul.f32 %v830, 1.442695
        %v891 = vpow.pop %v890
        %v892 = vmul.f32 %v831, 1.442695
        %v893 = vpow.pop %v892
        %v894 = vmul.f32 %v832, 1.442695
        %v895 = vpow.pop %v894
        %v896 = vmul.f32 %v833, 1.442695
        %v897 = vpow.pop %v896
        %v898 = vadd.f32 %v835, 1.0
        %v899 = vadd.f32 %v837, 1.0
        %v900 = vadd.f32 %v839, 1.0
        %v901 = vadd.f32 %v841, 1.0
        %v902 = vadd.f32 %v843, 1.0
        %v903 = vadd.f32 %v845, 1.0
        %v904 = vadd.f32 %v847, 1.0
        %v905 = vadd.f32 %v849, 1.0
        %v906 = vadd.f32 %v851, 1.0
        %v907 = vadd.f32 %v853, 1.0
        %v908 = vadd.f32 %v855, 1.0
        %v909 = vadd.f32 %v857, 1.0
        %v910 = vadd.f32 %v859, 1.0
        %v911 = vadd.f32 %v861, 1.0
        %v912 = vadd.f32 %v863, 1.0
        %v913 = vadd.f32 %v865, 1.0
        %v914 = vadd.f32 %v867, 1.0
        %v915 = vadd.f32 %v869, 1.0
        %v916 = vadd.f32 %v871, 1.0
        %v917 = vadd.f32 %v873, 1.0
        %v918 = vadd.f32 %v875, 1.0
        %v919 = vadd.f32 %v877, 1.0
        %v920 = vadd.f32 %v879, 1.0
        %v921 = vadd.f32 %v881, 1.0
        %v922 = vadd.f32 %v883, 1.0
        %v923 = vadd.f32 %v885, 1.0
        %v924 = vadd.f32 %v887, 1.0
        %v925 = vadd.f32 %v889, 1.0
        %v926 = vadd.f32 %v891, 1.0
        %v927 = vadd.f32 %v893, 1.0
        %v928 = vadd.f32 %v895, 1.0
        %v929 = vadd.f32 %v897, 1.0
        %v930 = vrcp.pop %v898
        %v931 = vrcp.pop %v899
        %v932 = vrcp.pop %v900
        %v933 = vrcp.pop %v901
        %v934 = vrcp.pop %v902
        %v935 = vrcp.pop %v903
        %v936 = vrcp.pop %v904
        %v937 = vrcp.pop %v905
        %v938 = vrcp.pop %v906
        %v939 = vrcp.pop %v907
        %v940 = vrcp.pop %v908
        %v941 = vrcp.pop %v909
        %v942 = vrcp.pop %v910
        %v943 = vrcp.pop %v911
        %v944 = vrcp.pop %v912
        %v945 = vrcp.pop %v913
        %v946 = vrcp.pop %v914
        %v947 = vrcp.pop %v915
        %v948 = vrcp.pop %v916
        %v949 = vrcp.pop %v917
        %v950 = vrcp.pop %v918
        %v951 = vrcp.pop %v919
        %v952 = vrcp.pop %v920
        %v953 = vrcp.pop %v921
        %v954 = vrcp.pop %v922
        %v955 = vrcp.pop %v923
        %v956 = vrcp.pop %v924
        %v957 = vrcp.pop %v925
        %v958 = vrcp.pop %v926
        %v959 = vrcp.pop %v927
        %v960 = vrcp.pop %v928
        %v961 = vrcp.pop %v929
        %v962 = vmul.f32 %v547, %v930
        %v963 = vmul.f32 %v549, %v931
        %v964 = vmul.f32 %v553, %v932
        %v965 = vmul.f32 %v555, %v933
        %v966 = vmul.f32 %v559, %v934
        %v967 = vmul.f32 %v561, %v935
        %v968 = vmul.f32 %v565, %v936
        %v969 = vmul.f32 %v567, %v937
        %v970 = vmul.f32 %v571, %v938
        %v971 = vmul.f32 %v573, %v939
        %v972 = vmul.f32 %v577, %v940
        %v973 = vmul.f32 %v579, %v941
        %v974 = vmul.f32 %v583, %v942
        %v975 = vmul.f32 %v585, %v943
        %v976 = vmul.f32 %v589, %v944
        %v977 = vmul.f32 %v591, %v945
        %v978 = vmul.f32 %v595, %v946
        %v979 = vmul.f32 %v597, %v947
        %v980 = vmul.f32 %v601, %v948
        %v981 = vmul.f32 %v603, %v949
        %v982 = vmul.f32 %v607, %v950
        %v983 = vmul.f32 %v609, %v951
        %v984 = vmul.f32 %v613, %v952
        %v985 = vmul.f32 %v615, %v953
        %v986 = vmul.f32 %v619, %v954
        %v987 = vmul.f32 %v621, %v955
        %v988 = vmul.f32 %v625, %v956
        %v989 = vmul.f32 %v627, %v957
        %v990 = vmul.f32 %v631, %v958
        %v991 = vmul.f32 %v633, %v959
        %v992 = vmul.f32 %v637, %v960
        %v993 = vmul.f32 %v639, %v961
        %v994 = vmul.f32 %v962, %v708
        %v995 = vmul.f32 %v963, %v710
        %v996 = vmul.f32 %v964, %v714
        %v997 = vmul.f32 %v965, %v716
        %v998 = vmul.f32 %v966, %v720
        %v999 = vmul.f32 %v967, %v722
        %v1000 = vmul.f32 %v968, %v726
        %v1001 = vmul.f32 %v969, %v728
        %v1002 = vmul.f32 %v970, %v732
        %v1003 = vmul.f32 %v971, %v734
        %v1004 = vmul.f32 %v972, %v738
        %v1005 = vmul.f32 %v973, %v740
        %v1006 = vmul.f32 %v974, %v744
        %v1007 = vmul.f32 %v975, %v746
        %v1008 = vmul.f32 %v976, %v750
        %v1009 = vmul.f32 %v977, %v752
        %v1010 = vmul.f32 %v978, %v756
        %v1011 = vmul.f32 %v979, %v758
        %v1012 = vmul.f32 %v980, %v762
        %v1013 = vmul.f32 %v981, %v764
        %v1014 = vmul.f32 %v982, %v768
        %v1015 = vmul.f32 %v983, %v770
        %v1016 = vmul.f32 %v984, %v774
        %v1017 = vmul.f32 %v985, %v776
        %v1018 = vmul.f32 %v986, %v780
        %v1019 = vmul.f32 %v987, %v782
        %v1020 = vmul.f32 %v988, %v786
        %v1021 = vmul.f32 %v989, %v788
        %v1022 = vmul.f32 %v990, %v792
        %v1023 = vmul.f32 %v991, %v794
        %v1024 = vmul.f32 %v992, %v798
        %v1025 = vmul.f32 %v993, %v800
        %v1026 = vld [vmem:[#allocation2] sm:$0xff]
        %v1027 = vld [vmem:[#allocation2 + $0x8] sm:$0xff]
        %v1028 = vld [vmem:[#allocation2 + $0x10] sm:$0xff]
        %v1029 = vld [vmem:[#allocation2 + $0x18] sm:$0xff]
        %v1030 = vld [vmem:[#allocation2 + $0x20] sm:$0xff]
        %v1031 = vld [vmem:[#allocation2 + $0x28] sm:$0xff]
        %v1032 = vld [vmem:[#allocation2 + $0x30] sm:$0xff]
        %v1033 = vld [vmem:[#allocation2 + $0x38] sm:$0xff]
        %v1034 = vld [vmem:[#allocation2 + $0x40] sm:$0xff]
        %v1035 = vld [vmem:[#allocation2 + $0x48] sm:$0xff]
        %v1036 = vld [vmem:[#allocation2 + $0x50] sm:$0xff]
        %v1037 = vld [vmem:[#allocation2 + $0x58] sm:$0xff]
        %v1038 = vld [vmem:[#allocation2 + $0x60] sm:$0xff]
        %v1039 = vld [vmem:[#allocation2 + $0x68] sm:$0xff]
        %v1040 = vld [vmem:[#allocation2 + $0x70] sm:$0xff]
        %v1041 = vld [vmem:[#allocation2 + $0x78] sm:$0xff]
        %v1042 = vld [vmem:[#allocation2 + $0x80] sm:$0xff]
        %v1043 = vld [vmem:[#allocation2 + $0x88] sm:$0xff]
        %v1044 = vld [vmem:[#allocation2 + $0x90] sm:$0xff]
        %v1045 = vld [vmem:[#allocation2 + $0x98] sm:$0xff]
        %v1046 = vld [vmem:[#allocation2 + $0xa0] sm:$0xff]
        %v1047 = vld [vmem:[#allocation2 + $0xa8] sm:$0xff]
        %v1048 = vld [vmem:[#allocation2 + $0xb0] sm:$0xff]
        %v1049 = vld [vmem:[#allocation2 + $0xb8] sm:$0xff]
        %v1050 = vld [vmem:[#allocation2 + $0xc0] sm:$0xff]
        %v1051 = vld [vmem:[#allocation2 + $0xc8] sm:$0xff]
        %v1052 = vld [vmem:[#allocation2 + $0xd0] sm:$0xff]
        %v1053 = vld [vmem:[#allocation2 + $0xd8] sm:$0xff]
        %v1054 = vld [vmem:[#allocation2 + $0xe0] sm:$0xff]
        %v1055 = vld [vmem:[#allocation2 + $0xe8] sm:$0xff]
        %v1056 = vld [vmem:[#allocation2 + $0xf0] sm:$0xff]
        %v1057 = vld [vmem:[#allocation2 + $0xf8] sm:$0xff]
        %v1058 = vld [vmem:[%s247] sm:$0xff]
        %v1059 = vld [vmem:[%s247 + $0x8] sm:$0xff]
        %v1060 = vld [vmem:[%s247 + $0x10] sm:$0xff]
        %v1061 = vld [vmem:[%s247 + $0x18] sm:$0xff]
        %v1062 = vld [vmem:[%s247 + $0x20] sm:$0xff]
        %v1063 = vld [vmem:[%s247 + $0x28] sm:$0xff]
        %v1064 = vld [vmem:[%s247 + $0x30] sm:$0xff]
        %v1065 = vld [vmem:[%s247 + $0x38] sm:$0xff]
        %v1066 = vld [vmem:[%s247 + $0x40] sm:$0xff]
        %v1067 = vld [vmem:[%s247 + $0x48] sm:$0xff]
        %v1068 = vld [vmem:[%s247 + $0x50] sm:$0xff]
        %v1069 = vld [vmem:[%s247 + $0x58] sm:$0xff]
        %v1070 = vld [vmem:[%s247 + $0x60] sm:$0xff]
        %v1071 = vld [vmem:[%s247 + $0x68] sm:$0xff]
        %v1072 = vld [vmem:[%s247 + $0x70] sm:$0xff]
        %v1073 = vld [vmem:[%s247 + $0x78] sm:$0xff]
        %v1074 = vld [vmem:[%s247 + $0x80] sm:$0xff]
        %v1075 = vld [vmem:[%s247 + $0x88] sm:$0xff]
        %v1076 = vld [vmem:[%s247 + $0x90] sm:$0xff]
        %v1077 = vld [vmem:[%s247 + $0x98] sm:$0xff]
        %v1078 = vld [vmem:[%s247 + $0xa0] sm:$0xff]
        %v1079 = vld [vmem:[%s247 + $0xa8] sm:$0xff]
        %v1080 = vld [vmem:[%s247 + $0xb0] sm:$0xff]
        %v1081 = vld [vmem:[%s247 + $0xb8] sm:$0xff]
        %v1082 = vld [vmem:[%s247 + $0xc0] sm:$0xff]
        %v1083 = vld [vmem:[%s247 + $0xc8] sm:$0xff]
        %v1084 = vld [vmem:[%s247 + $0xd0] sm:$0xff]
        %v1085 = vld [vmem:[%s247 + $0xd8] sm:$0xff]
        %v1086 = vld [vmem:[%s247 + $0xe0] sm:$0xff]
        %v1087 = vld [vmem:[%s247 + $0xe8] sm:$0xff]
        %v1088 = vld [vmem:[%s247 + $0xf0] sm:$0xff]
        %v1089 = vld [vmem:[%s247 + $0xf8] sm:$0xff]
        %v1090 = vld [vmem:[%s247 + $0x100] sm:$0xff]
        %v1091 = vld [vmem:[%s247 + $0x108] sm:$0xff]
        %v1092 = vld [vmem:[%s247 + $0x110] sm:$0xff]
        %v1093 = vld [vmem:[%s247 + $0x118] sm:$0xff]
        %v1094 = vld [vmem:[%s247 + $0x120] sm:$0xff]
        %v1095 = vld [vmem:[%s247 + $0x128] sm:$0xff]
        %v1096 = vld [vmem:[%s247 + $0x130] sm:$0xff]
        %v1097 = vld [vmem:[%s247 + $0x138] sm:$0xff]
        %v1098 = vld [vmem:[%s247 + $0x140] sm:$0xff]
        %v1099 = vld [vmem:[%s247 + $0x148] sm:$0xff]
        %v1100 = vld [vmem:[%s247 + $0x150] sm:$0xff]
        %v1101 = vld [vmem:[%s247 + $0x158] sm:$0xff]
        %v1102 = vld [vmem:[%s247 + $0x160] sm:$0xff]
        %v1103 = vld [vmem:[%s247 + $0x168] sm:$0xff]
        %v1104 = vld [vmem:[%s247 + $0x170] sm:$0xff]
        %v1105 = vld [vmem:[%s247 + $0x178] sm:$0xff]
        %v1106 = vld [vmem:[%s247 + $0x180] sm:$0xff]
        %v1107 = vld [vmem:[%s247 + $0x188] sm:$0xff]
        %v1108 = vld [vmem:[%s247 + $0x190] sm:$0xff]
        %v1109 = vld [vmem:[%s247 + $0x198] sm:$0xff]
        %v1110 = vld [vmem:[%s247 + $0x1a0] sm:$0xff]
        %v1111 = vld [vmem:[%s247 + $0x1a8] sm:$0xff]
        %v1112 = vld [vmem:[%s247 + $0x1b0] sm:$0xff]
        %v1113 = vld [vmem:[%s247 + $0x1b8] sm:$0xff]
        %v1114 = vld [vmem:[%s247 + $0x1c0] sm:$0xff]
        %v1115 = vld [vmem:[%s247 + $0x1c8] sm:$0xff]
        %v1116 = vld [vmem:[%s247 + $0x1d0] sm:$0xff]
        %v1117 = vld [vmem:[%s247 + $0x1d8] sm:$0xff]
        %v1118 = vld [vmem:[%s247 + $0x1e0] sm:$0xff]
        %v1119 = vld [vmem:[%s247 + $0x1e8] sm:$0xff]
        %v1120 = vld [vmem:[%s247 + $0x1f0] sm:$0xff]
        %v1121 = vld [vmem:[%s247 + $0x1f8] sm:$0xff]
        %1122 = vmatprep.subr.mxu0 %v1059
        %1123 = vmatpush1.msra.mxu0 %v1058
        %1124 = vmatprep.subr.mxu0 %v1061
        %1125 = vmatpush1.msra.mxu0 %v1060
        %1126 = vmatprep.subr.mxu0 %v1063
        %1127 = vmatpush1.msra.mxu0 %v1062
        %1128 = vmatprep.subr.mxu0 %v1065
        %1129 = vmatpush1.msra.mxu0 %v1064
        %1130 = vmatprep.subr.mxu0 %v1067
        %1131 = vmatpush1.msra.mxu0 %v1066
        %1132 = vmatprep.subr.mxu0 %v1069
        %1133 = vmatpush1.msra.mxu0 %v1068
        %1134 = vmatprep.subr.mxu0 %v1071
        %1135 = vmatpush1.msra.mxu0 %v1070
        %1136 = vmatprep.subr.mxu0 %v1073
        %1137 = vmatpush1.msra.mxu0 %v1072
        %1138 = vmatprep.subr.mxu0 %v1075
        %1139 = vmatpush1.msra.mxu0 %v1074
        %1140 = vmatprep.subr.mxu0 %v1077
        %1141 = vmatpush1.msra.mxu0 %v1076
        %1142 = vmatprep.subr.mxu0 %v1079
        %1143 = vmatpush1.msra.mxu0 %v1078
        %1144 = vmatprep.subr.mxu0 %v1081
        %1145 = vmatpush1.msra.mxu0 %v1080
        %1146 = vmatprep.subr.mxu0 %v1083
        %1147 = vmatpush1.msra.mxu0 %v1082
        %1148 = vmatprep.subr.mxu0 %v1085
        %1149 = vmatpush1.msra.mxu0 %v1084
        %1150 = vmatprep.subr.mxu0 %v1087
        %1151 = vmatpush1.msra.mxu0 %v1086
        %1152 = vmatprep.subr.mxu0 %v1089
        %1153 = vmatpush1.msra.mxu0 %v1088
        %1154 = vmatprep.subr.mxu0 %v1091
        %1155 = vmatpush1.msra.mxu0 %v1090
        %1156 = vmatprep.subr.mxu0 %v1093
        %1157 = vmatpush1.msra.mxu0 %v1092
        %1158 = vmatprep.subr.mxu0 %v1095
        %1159 = vmatpush1.msra.mxu0 %v1094
        %1160 = vmatprep.subr.mxu0 %v1097
        %1161 = vmatpush1.msra.mxu0 %v1096
        %1162 = vmatprep.subr.mxu0 %v1099
        %1163 = vmatpush1.msra.mxu0 %v1098
        %1164 = vmatprep.subr.mxu0 %v1101
        %1165 = vmatpush1.msra.mxu0 %v1100
        %1166 = vmatprep.subr.mxu0 %v1103
        %1167 = vmatpush1.msra.mxu0 %v1102
        %1168 = vmatprep.subr.mxu0 %v1105
        %1169 = vmatpush1.msra.mxu0 %v1104
        %1170 = vmatprep.subr.mxu0 %v1107
        %1171 = vmatpush1.msra.mxu0 %v1106
        %1172 = vmatprep.subr.mxu0 %v1109
        %1173 = vmatpush1.msra.mxu0 %v1108
        %1174 = vmatprep.subr.mxu0 %v1111
        %1175 = vmatpush1.msra.mxu0 %v1110
        %1176 = vmatprep.subr.mxu0 %v1113
        %1177 = vmatpush1.msra.mxu0 %v1112
        %1178 = vmatprep.subr.mxu0 %v1115
        %1179 = vmatpush1.msra.mxu0 %v1114
        %1180 = vmatprep.subr.mxu0 %v1117
        %1181 = vmatpush1.msra.mxu0 %v1116
        %1182 = vmatprep.subr.mxu0 %v1119
        %1183 = vmatpush1.msra.mxu0 %v1118
        %1184 = vmatprep.subr.mxu0 %v1121
        %1185 = vmatpush1.msra.mxu0 %v1120
        %1186 = vmatprep.mubr.f32.mxu0 %v995
        %1187 = vmatmul.mubr.f32.gmra.mrb[0].mxu0 %v994
        %v1188 = vpop.f32.mrb[0].mxu0
        %v1189 = vadd.f32 0.0, %v1188
        %v1190 = vpop.f32.mrb[0].mxu0
        %v1191 = vadd.f32 0.0, %v1190
        %1192 = vmatprep.mubr.f32.mxu0 %v997
        %1193 = vmatmul.mubr.f32.gmra.mrb[0].mxu0 %v996
        %v1194 = vpop.f32.mrb[0].mxu0
        %v1195 = vadd.f32 0.0, %v1194
        %v1196 = vpop.f32.mrb[0].mxu0
        %v1197 = vadd.f32 0.0, %v1196
        %1198 = vmatprep.mubr.f32.mxu0 %v999
        %1199 = vmatmul.mubr.f32.gmra.mrb[0].mxu0 %v998
        %v1200 = vpop.f32.mrb[0].mxu0
        %v1201 = vadd.f32 0.0, %v1200
        %v1202 = vpop.f32.mrb[0].mxu0
        %v1203 = vadd.f32 0.0, %v1202
        %1204 = vmatprep.mubr.f32.mxu0 %v1001
        %1205 = vmatmul.mubr.f32.gmra.mrb[0].mxu0 %v1000
        %v1206 = vpop.f32.mrb[0].mxu0
        %v1207 = vadd.f32 0.0, %v1206
        %v1208 = vpop.f32.mrb[0].mxu0
        %v1209 = vadd.f32 0.0, %v1208
        %1210 = vmatprep.mubr.f32.mxu0 %v1003
        %1211 = vmatmul.mubr.f32.gmra.mrb[0].mxu0 %v1002
        %v1212 = vpop.f32.mrb[0].mxu0
        %v1213 = vadd.f32 0.0, %v1212
        %v1214 = vpop.f32.mrb[0].mxu0
        %v1215 = vadd.f32 0.0, %v1214
        %1216 = vmatprep.mubr.f32.mxu0 %v1005
        %1217 = vmatmul.mubr.f32.gmra.mrb[0].mxu0 %v1004
        %v1218 = vpop.f32.mrb[0].mxu0
        %v1219 = vadd.f32 0.0, %v1218
        %v1220 = vpop.f32.mrb[0].mxu0
        %v1221 = vadd.f32 0.0, %v1220
        %1222 = vmatprep.mubr.f32.mxu0 %v1007
        %1223 = vmatmul.mubr.f32.gmra.mrb[0].mxu0 %v1006
        %v1224 = vpop.f32.mrb[0].mxu0
        %v1225 = vadd.f32 0.0, %v1224
        %v1226 = vpop.f32.mrb[0].mxu0
        %v1227 = vadd.f32 0.0, %v1226
        %1228 = vmatprep.mubr.f32.mxu0 %v1009
        %1229 = vmatmul.mubr.f32.gmra.mrb[0].mxu0 %v1008
        %v1230 = vpop.f32.mrb[0].mxu0
        %v1231 = vadd.f32 0.0, %v1230
        %v1232 = vpop.f32.mrb[0].mxu0
        %v1233 = vadd.f32 0.0, %v1232
        %1234 = vmatprep.mubr.f32.mxu0 %v1011
        %1235 = vmatmul.mubr.f32.gmra.mrb[0].mxu0 %v1010
        %v1236 = vpop.f32.mrb[0].mxu0
        %v1237 = vadd.f32 0.0, %v1236
        %v1238 = vpop.f32.mrb[0].mxu0
        %v1239 = vadd.f32 0.0, %v1238
        %1240 = vmatprep.mubr.f32.mxu0 %v1013
        %1241 = vmatmul.mubr.f32.gmra.mrb[0].mxu0 %v1012
        %v1242 = vpop.f32.mrb[0].mxu0
        %v1243 = vadd.f32 0.0, %v1242
        %v1244 = vpop.f32.mrb[0].mxu0
        %v1245 = vadd.f32 0.0, %v1244
        %1246 = vmatprep.mubr.f32.mxu0 %v1015
        %1247 = vmatmul.mubr.f32.gmra.mrb[0].mxu0 %v1014
        %v1248 = vpop.f32.mrb[0].mxu0
        %v1249 = vadd.f32 0.0, %v1248
        %v1250 = vpop.f32.mrb[0].mxu0
        %v1251 = vadd.f32 0.0, %v1250
        %1252 = vmatprep.mubr.f32.mxu0 %v1017
        %1253 = vmatmul.mubr.f32.gmra.mrb[0].mxu0 %v1016
        %v1254 = vpop.f32.mrb[0].mxu0
        %v1255 = vadd.f32 0.0, %v1254
        %v1256 = vpop.f32.mrb[0].mxu0
        %v1257 = vadd.f32 0.0, %v1256
        %1258 = vmatprep.mubr.f32.mxu0 %v1019
        %1259 = vmatmul.mubr.f32.gmra.mrb[0].mxu0 %v1018
        %v1260 = vpop.f32.mrb[0].mxu0
        %v1261 = vadd.f32 0.0, %v1260
        %v1262 = vpop.f32.mrb[0].mxu0
        %v1263 = vadd.f32 0.0, %v1262
        %1264 = vmatprep.mubr.f32.mxu0 %v1021
        %1265 = vmatmul.mubr.f32.gmra.mrb[0].mxu0 %v1020
        %v1266 = vpop.f32.mrb[0].mxu0
        %v1267 = vadd.f32 0.0, %v1266
        %v1268 = vpop.f32.mrb[0].mxu0
        %v1269 = vadd.f32 0.0, %v1268
        %1270 = vmatprep.mubr.f32.mxu0 %v1023
        %1271 = vmatmul.mubr.f32.gmra.mrb[0].mxu0 %v1022
        %v1272 = vpop.f32.mrb[0].mxu0
        %v1273 = vadd.f32 0.0, %v1272
        %v1274 = vpop.f32.mrb[0].mxu0
        %v1275 = vadd.f32 0.0, %v1274
        %1276 = vmatprep.mubr.f32.mxu0 %v1025
        %1277 = vmatmul.mubr.f32.gmra.mrb[0].mxu0 %v1024
        %v1278 = vpop.f32.mrb[0].mxu0
        %v1279 = vadd.f32 0.0, %v1278
        %v1280 = vpop.f32.mrb[0].mxu0
        %v1281 = vadd.f32 0.0, %v1280
        %1282 = vdwg.mxu0
        %v1283 = vadd.f32 %v1026, %v1189
        %v1284 = vadd.f32 %v1027, %v1191
        %v1285 = vadd.f32 %v1028, %v1195
        %v1286 = vadd.f32 %v1029, %v1197
        %v1287 = vadd.f32 %v1030, %v1201
        %v1288 = vadd.f32 %v1031, %v1203
        %v1289 = vadd.f32 %v1032, %v1207
        %v1290 = vadd.f32 %v1033, %v1209
        %v1291 = vadd.f32 %v1034, %v1213
        %v1292 = vadd.f32 %v1035, %v1215
        %v1293 = vadd.f32 %v1036, %v1219
        %v1294 = vadd.f32 %v1037, %v1221
        %v1295 = vadd.f32 %v1038, %v1225
        %v1296 = vadd.f32 %v1039, %v1227
        %v1297 = vadd.f32 %v1040, %v1231
        %v1298 = vadd.f32 %v1041, %v1233
        %v1299 = vadd.f32 %v1042, %v1237
        %v1300 = vadd.f32 %v1043, %v1239
        %v1301 = vadd.f32 %v1044, %v1243
        %v1302 = vadd.f32 %v1045, %v1245
        %v1303 = vadd.f32 %v1046, %v1249
        %v1304 = vadd.f32 %v1047, %v1251
        %v1305 = vadd.f32 %v1048, %v1255
        %v1306 = vadd.f32 %v1049, %v1257
        %v1307 = vadd.f32 %v1050, %v1261
        %v1308 = vadd.f32 %v1051, %v1263
        %v1309 = vadd.f32 %v1052, %v1267
        %v1310 = vadd.f32 %v1053, %v1269
        %v1311 = vadd.f32 %v1054, %v1273
        %v1312 = vadd.f32 %v1055, %v1275
        %v1313 = vadd.f32 %v1056, %v1279
        %v1314 = vadd.f32 %v1057, %v1281
        %1315 = vst [vmem:[#allocation2] sm:$0xff] %v1283
        %1316 = vst [vmem:[#allocation2 + $0x8] sm:$0xff] %v1284
        %1317 = vst [vmem:[#allocation2 + $0x10] sm:$0xff] %v1285
        %1318 = vst [vmem:[#allocation2 + $0x18] sm:$0xff] %v1286
        %1319 = vst [vmem:[#allocation2 + $0x20] sm:$0xff] %v1287
        %1320 = vst [vmem:[#allocation2 + $0x28] sm:$0xff] %v1288
        %1321 = vst [vmem:[#allocation2 + $0x30] sm:$0xff] %v1289
        %1322 = vst [vmem:[#allocation2 + $0x38] sm:$0xff] %v1290
        %1323 = vst [vmem:[#allocation2 + $0x40] sm:$0xff] %v1291
        %1324 = vst [vmem:[#allocation2 + $0x48] sm:$0xff] %v1292
        %1325 = vst [vmem:[#allocation2 + $0x50] sm:$0xff] %v1293
        %1326 = vst [vmem:[#allocation2 + $0x58] sm:$0xff] %v1294
        %1327 = vst [vmem:[#allocation2 + $0x60] sm:$0xff] %v1295
        %1328 = vst [vmem:[#allocation2 + $0x68] sm:$0xff] %v1296
        %1329 = vst [vmem:[#allocation2 + $0x70] sm:$0xff] %v1297
        %1330 = vst [vmem:[#allocation2 + $0x78] sm:$0xff] %v1298
        %1331 = vst [vmem:[#allocation2 + $0x80] sm:$0xff] %v1299
        %1332 = vst [vmem:[#allocation2 + $0x88] sm:$0xff] %v1300
        %1333 = vst [vmem:[#allocation2 + $0x90] sm:$0xff] %v1301
        %1334 = vst [vmem:[#allocation2 + $0x98] sm:$0xff] %v1302
        %1335 = vst [vmem:[#allocation2 + $0xa0] sm:$0xff] %v1303
        %1336 = vst [vmem:[#allocation2 + $0xa8] sm:$0xff] %v1304
        %1337 = vst [vmem:[#allocation2 + $0xb0] sm:$0xff] %v1305
        %1338 = vst [vmem:[#allocation2 + $0xb8] sm:$0xff] %v1306
        %1339 = vst [vmem:[#allocation2 + $0xc0] sm:$0xff] %v1307
        %1340 = vst [vmem:[#allocation2 + $0xc8] sm:$0xff] %v1308
        %1341 = vst [vmem:[#allocation2 + $0xd0] sm:$0xff] %v1309
        %1342 = vst [vmem:[#allocation2 + $0xd8] sm:$0xff] %v1310
        %1343 = vst [vmem:[#allocation2 + $0xe0] sm:$0xff] %v1311
        %1344 = vst [vmem:[#allocation2 + $0xe8] sm:$0xff] %v1312
        %1345 = vst [vmem:[#allocation2 + $0xf0] sm:$0xff] %v1313
        %1346 = vst [vmem:[#allocation2 + $0xf8] sm:$0xff] %v1314
        %p1347 = scmp.eq.s32.totalorder %s28, 1
        // Predicated region
        $region49: #{tpu_custom_call.1} parent=31 // pred_check
          %p1348 = pneg %p1347
        $region50: #{tpu_custom_call.1} parent=31 // pred_check_branch
          %1350 = sbr.rel (%p1348) target = $region52
        $region51: #{tpu_custom_call.1} parent=31 // pred_region
          %v1351 = vld [vmem:[#allocation2] sm:$0xff]
          %v1352 = vld [vmem:[#allocation2 + $0x8] sm:$0xff]
          %v1353 = vld [vmem:[#allocation2 + $0x10] sm:$0xff]
          %v1354 = vld [vmem:[#allocation2 + $0x18] sm:$0xff]
          %v1355 = vld [vmem:[#allocation2 + $0x20] sm:$0xff]
          %v1356 = vld [vmem:[#allocation2 + $0x28] sm:$0xff]
          %v1357 = vld [vmem:[#allocation2 + $0x30] sm:$0xff]
          %v1358 = vld [vmem:[#allocation2 + $0x38] sm:$0xff]
          %v1359 = vld [vmem:[#allocation2 + $0x40] sm:$0xff]
          %v1360 = vld [vmem:[#allocation2 + $0x48] sm:$0xff]
          %v1361 = vld [vmem:[#allocation2 + $0x50] sm:$0xff]
          %v1362 = vld [vmem:[#allocation2 + $0x58] sm:$0xff]
          %v1363 = vld [vmem:[#allocation2 + $0x60] sm:$0xff]
          %v1364 = vld [vmem:[#allocation2 + $0x68] sm:$0xff]
          %v1365 = vld [vmem:[#allocation2 + $0x70] sm:$0xff]
          %v1366 = vld [vmem:[#allocation2 + $0x78] sm:$0xff]
          %v1367 = vld [vmem:[#allocation2 + $0x80] sm:$0xff]
          %v1368 = vld [vmem:[#allocation2 + $0x88] sm:$0xff]
          %v1369 = vld [vmem:[#allocation2 + $0x90] sm:$0xff]
          %v1370 = vld [vmem:[#allocation2 + $0x98] sm:$0xff]
          %v1371 = vld [vmem:[#allocation2 + $0xa0] sm:$0xff]
          %v1372 = vld [vmem:[#allocation2 + $0xa8] sm:$0xff]
          %v1373 = vld [vmem:[#allocation2 + $0xb0] sm:$0xff]
          %v1374 = vld [vmem:[#allocation2 + $0xb8] sm:$0xff]
          %v1375 = vld [vmem:[#allocation2 + $0xc0] sm:$0xff]
          %v1376 = vld [vmem:[#allocation2 + $0xc8] sm:$0xff]
          %v1377 = vld [vmem:[#allocation2 + $0xd0] sm:$0xff]
          %v1378 = vld [vmem:[#allocation2 + $0xd8] sm:$0xff]
          %v1379 = vld [vmem:[#allocation2 + $0xe0] sm:$0xff]
          %v1380 = vld [vmem:[#allocation2 + $0xe8] sm:$0xff]
          %v1381 = vld [vmem:[#allocation2 + $0xf0] sm:$0xff]
          %v1382 = vld [vmem:[#allocation2 + $0xf8] sm:$0xff]
          %1383 = vst [vmem:[%s279] sm:$0xff] %v1351
          %1384 = vst [vmem:[%s279 + $0x8] sm:$0xff] %v1352
          %1385 = vst [vmem:[%s279 + $0x10] sm:$0xff] %v1353
          %1386 = vst [vmem:[%s279 + $0x18] sm:$0xff] %v1354
          %1387 = vst [vmem:[%s279 + $0x20] sm:$0xff] %v1355
          %1388 = vst [vmem:[%s279 + $0x28] sm:$0xff] %v1356
          %1389 = vst [vmem:[%s279 + $0x30] sm:$0xff] %v1357
          %1390 = vst [vmem:[%s279 + $0x38] sm:$0xff] %v1358
          %1391 = vst [vmem:[%s279 + $0x40] sm:$0xff] %v1359
          %1392 = vst [vmem:[%s279 + $0x48] sm:$0xff] %v1360
          %1393 = vst [vmem:[%s279 + $0x50] sm:$0xff] %v1361
          %1394 = vst [vmem:[%s279 + $0x58] sm:$0xff] %v1362
          %1395 = vst [vmem:[%s279 + $0x60] sm:$0xff] %v1363
          %1396 = vst [vmem:[%s279 + $0x68] sm:$0xff] %v1364
          %1397 = vst [vmem:[%s279 + $0x70] sm:$0xff] %v1365
          %1398 = vst [vmem:[%s279 + $0x78] sm:$0xff] %v1366
          %1399 = vst [vmem:[%s279 + $0x80] sm:$0xff] %v1367
          %1400 = vst [vmem:[%s279 + $0x88] sm:$0xff] %v1368
          %1401 = vst [vmem:[%s279 + $0x90] sm:$0xff] %v1369
          %1402 = vst [vmem:[%s279 + $0x98] sm:$0xff] %v1370
          %1403 = vst [vmem:[%s279 + $0xa0] sm:$0xff] %v1371
          %1404 = vst [vmem:[%s279 + $0xa8] sm:$0xff] %v1372
          %1405 = vst [vmem:[%s279 + $0xb0] sm:$0xff] %v1373
          %1406 = vst [vmem:[%s279 + $0xb8] sm:$0xff] %v1374
          %1407 = vst [vmem:[%s279 + $0xc0] sm:$0xff] %v1375
          %1408 = vst [vmem:[%s279 + $0xc8] sm:$0xff] %v1376
          %1409 = vst [vmem:[%s279 + $0xd0] sm:$0xff] %v1377
          %1410 = vst [vmem:[%s279 + $0xd8] sm:$0xff] %v1378
          %1411 = vst [vmem:[%s279 + $0xe0] sm:$0xff] %v1379
          %1412 = vst [vmem:[%s279 + $0xe8] sm:$0xff] %v1380
          %1413 = vst [vmem:[%s279 + $0xf0] sm:$0xff] %v1381
          %1414 = vst [vmem:[%s279 + $0xf8] sm:$0xff] %v1382
        $region52: #{tpu_custom_call.1} parent=31 // pred_fallthru
          _
        %s1415 = sand.u32 %s121, 1
        %s1416 = scalar_lea.sflag [#allocation5], %s1415
        %s1417 = sand.u32 %s121, 1
        %s1418 = smul.addr %s1417, 256
        %s1419 = scalar_lea.vmem [#allocation9], %s1418
        // Predicated region
        $region53: #{tpu_custom_call.1} parent=31 // pred_check
          %p1420 = pneg %p131
        $region54: #{tpu_custom_call.1} parent=31 // pred_check_branch
          %1422 = sbr.rel (%p1420) target = $region56
        $region55: #{tpu_custom_call.1} parent=31 // pred_region
          %s1423 = smul.u32 16, %s27
          %s1425 = ssub.s32 4096, 4096
          %1426 = vsyncadd %s1416, %s1425
          %s1427 = smul.addr %s1423, 2
          %s1428 = smul.addr %s1427, 128
          %s1429 = scalar_lea.hbm %s3, %s1428
          %s1430 = sshll.u32 %s1419, 4
          %s1431 = int_to_ptr.vmem [resolvable:$true] %s1430
          %1436 = dma.vmem_to_hbm [thread:$0]  %s1431, 4096, %s1429, %s1416, 256, 256, 16
        $region56: #{tpu_custom_call.1} parent=31 // pred_fallthru
          _
      $region32: #{tpu_custom_call.1} parent=5 // pred_fallthru
        _
      %p1437 = scmp.le.s32.totalorder 2, %s18
      // Predicated region
      $region57: #{tpu_custom_call.1} parent=5 // pred_check
        %p1438 = pneg %p1437
      $region58: #{tpu_custom_call.1} parent=5 // pred_check_branch
        %1440 = sbr.rel (%p1438) target = $region60
      $region59: #{tpu_custom_call.1} parent=5 // pred_region
        %s1441 = ssub.s32 %s18, 2
        // Predicated region
        $region61: #{tpu_custom_call.1} parent=59 // pred_check
          %p1442 = pneg %p137
        $region62: #{tpu_custom_call.1} parent=59 // pred_check_branch
          %1444 = sbr.rel (%p1442) target = $region64
        $region63: #{tpu_custom_call.1} parent=59 // pred_region
          %s1445 = sand.u32 %s122, 1
          %s1446 = scalar_lea.sflag [#allocation5], %s1445
          %s1447 = sand.u32 %s122, 1
          %s1448 = smul.addr %s1447, 256
          %s1449 = scalar_lea.vmem [#allocation9], %s1448
          %1450 = dma.done %s1446, 4096
        $region64: #{tpu_custom_call.1} parent=59 // pred_fallthru
          _
      $region60: #{tpu_custom_call.1} parent=5 // pred_fallthru
        _
    $region6: #{tpu_custom_call.1} parent=1 // loop_footer
      %s22 = sadd.s32 1, %s18
    $region7: #{tpu_custom_call.1} parent=1 // loop_footer_branch
      %17 = sbr.rel target = $region3
    $region8: #{tpu_custom_call.1} parent=1 // loop_exit
      _
    %1451 = vsyncpa [#allocation4], 1
    %s1452 = scalar_lea.sflag [#allocation4], 1
    %1453 = vsyncpa %s1452, 1
    %1454 = vsyncpa [#allocation7], 1
    %s1455 = scalar_lea.sflag [#allocation7], 1
    %1456 = vsyncpa %s1455, 1
    %1457 = vsyncpa [#allocation5], 1
    %s1458 = scalar_lea.sflag [#allocation5], 1
    %1459 = vsyncpa %s1458, 1

</llo_original>
